<compile_context>
chip_gen: v5e
topology: v5e:2x2
jax: 0.10.0
libtpu: 0.0.40
codegen_flags: <defaults>
</compile_context>

<pallas_src>
import numpy as np
import jax
import jax.numpy as jnp
from jax import lax
from jax.experimental import pallas as pl
from jax.experimental.pallas import tpu as pltpu

EMBED_DIM = 128      # full 128-lane embeddings
TEMP = 0.07          # SimCLR softmax temperature
N_VIEWS = 2
MLP = True           # exercise the mlp=True branch of SimCLR.__init__

INV_SQRT_TEMP = float(1.0 / np.sqrt(TEMP))   # folded into the normalization
VMEM_LIMIT_BYTES = 48 * 1024 * 1024          # > 16/32 MiB defaults, < v7x 64 MiB physical


def _pick_tile(total, max_tile, granule):
    """Largest divisor of `total` that is a multiple of `granule`, <= max_tile,
    and (when possible) leaves >= 2 grid steps (v7x has 2 TensorCores)."""
    best = granule
    cap = min(max_tile, max(granule, total // 2))
    t = granule
    while t <= cap:
        if total % t == 0:
            best = t
        t += granule
    return best


# ---------------------------------------------------------------------------
# pltpu.roll convention probe (run once on the real backend).
# We need shifted views slab[:, c-1] / slab[:, c+1]; probing makes the logits
# reorder correct regardless of the rotate direction convention.
# ---------------------------------------------------------------------------
_ROLL_IS_JNP = None


def _roll_matches_jnp():
    """True iff pltpu.roll(x, shift=s, axis=-1)[..., c] == x[..., c - s]."""
    global _ROLL_IS_JNP
    if _ROLL_IS_JNP is None:
        def probe_kernel(x_ref, o_ref):
            o_ref[...] = pltpu.roll(x_ref[...], shift=1, axis=1)

        x = jnp.tile(jnp.arange(128, dtype=jnp.float32)[None, :], (8, 1))
        y = pl.pallas_call(
            probe_kernel,
            out_shape=jax.ShapeDtypeStruct((8, 128), jnp.float32),
        )(x)
        _ROLL_IS_JNP = bool(np.asarray(y)[0, 1] == 0.0)
    return _ROLL_IS_JNP


def _build_gather_index(n, bs):
    """TEST-ONLY (reference): column order after PyTorch's boolean-mask reorder:
    positive (j == (i+bs) % n) first, then negatives in increasing column order,
    diagonal removed (n_views == 2 semantics)."""
    idx = np.zeros((n, n - 1), dtype=np.int32)
    for i in range(n):
        pos = (i + bs) % n
        cols = [pos] + [j for j in range(n) if j != i and j != pos]
        idx[i] = np.asarray(cols, dtype=np.int32)
    return idx


# ---------------------------------------------------------------------------
# Kernel A: encoder (mean-pool + Linear) + MLP head + L2 normalize (* 1/sqrt(T))
# ---------------------------------------------------------------------------
def _encode_kernel(q_ref, k_ref, we_ref, be_ref, w1_ref, b1_ref, w2_ref, b2_ref,
                   out_ref):
    tb = q_ref.shape[0]
    pooled_q = jnp.mean(q_ref[...], axis=1)                        # (tb, F)
    pooled_k = jnp.mean(k_ref[...], axis=1)                        # (tb, F)
    # Stack q|k so the Linear/MLP chain runs once per grid step (2x MXU M dim).
    x = jnp.concatenate([pooled_q, pooled_k], axis=0)              # (2*tb, F)

    feats = jnp.dot(x, we_ref[...],
                    preferred_element_type=jnp.float32) + be_ref[...]   # (2*tb, E)
    if MLP:
        h = jnp.dot(feats, w1_ref[...],
                    preferred_element_type=jnp.float32) + b1_ref[...]
        h = jnp.maximum(h, 0.0)                                     # ReLU (f32 VPU)
        feats = jnp.dot(h, w2_ref[...],
                        preferred_element_type=jnp.float32) + b2_ref[...]

    # F.normalize(dim=1, eps=1e-12), with 1/sqrt(TEMP) folded in so the N x N
    # matmul directly yields sim / TEMP (no extra N x N pass).
    sumsq = jnp.sum(feats * feats, axis=1, keepdims=True)
    scale = lax.rsqrt(jnp.maximum(sumsq, 1e-24)) * INV_SQRT_TEMP    # EUP rsqrt
    nf = (feats * scale).astype(out_ref.dtype)                      # -> bf16

    out_ref[0] = nf[:tb]    # rows [0, bs)    == q half of torch.cat
    out_ref[1] = nf[tb:]    # rows [bs, 2*bs) == k half of torch.cat


def simclr_forward(input_q, input_k, params):
    """Returns (logits (N, N-1) f32, labels (N,) int32), matching SimCLR.forward."""
    bs, t, f = input_q.shape
    assert input_k.shape == (bs, t, f)
    n = N_VIEWS * bs
    e = params['we'].shape[1]

    # --- lane-dense feature dim: zero-pad f (and the matching `we` rows) to 128 ---
    f_pad = ((f + 127) // 128) * 128
    we = params['we']
    if f_pad != f:
        input_q = jnp.pad(input_q, ((0, 0), (0, 0), (0, f_pad - f)))
        input_k = jnp.pad(input_k, ((0, 0), (0, 0), (0, f_pad - f)))
        we = jnp.pad(we, ((0, f_pad - f), (0, 0)))
    f = f_pad

    # --- encoder batch tile: largest divisor <= 256, multiple of 16 (bf16 out),
    #     leaving >= 2 grid steps for the two v7x TensorCores ---
    tb = _pick_tile(bs, 256, 16)
    assert bs % tb == 0

    const = lambda shape: pl.BlockSpec(shape, lambda i, _s=shape: (0,) * len(_s))
    normed2 = pl.pallas_call(
        _encode_kernel,
        grid=(bs // tb,),
        in_specs=[pl.BlockSpec((tb, t, f), lambda i: (i, 0, 0)),   # q tile
                  pl.BlockSpec((tb, t, f), lambda i: (i, 0, 0)),   # k tile
                  const((f, e)), const((1, e)),                    # encoder Linear
                  const((e, e)), const((1, e)),                    # MLP layer 1
                  const((e, e)), const((1, e))],                   # MLP layer 2
        out_specs=pl.BlockSpec((2, tb, e), lambda i: (0, i, 0)),
        out_shape=jax.ShapeDtypeStruct((2, bs, e), jnp.bfloat16),
        compiler_params=pltpu.CompilerParams(
            dimension_semantics=("parallel",),
            vmem_limit_bytes=VMEM_LIMIT_BYTES),
    )(input_q, input_k, we, params['be'], params['w1'], params['b1'],
      params['w2'], params['b2'])

    # (2, bs, E) -> (N, E): contiguous row-major reshape == torch.cat((q, k), 0)
    normed = normed2.reshape(n, e)
    # Pre-transposed cols operand (one cheap XLA transpose of an N x 128 array)
    # so kernel B is a standard (tm,E)@(E,N) contraction — no in-kernel RHS transpose.
    normed_t = normed.T                                    # (E, N) bf16

    # --- kernel B tiling: row tile, largest divisor <= 256 with >= 2 grid steps ---
    tm = _pick_tile(n, 256, 8)
    assert n % tm == 0

    prev_shift, next_shift = (1, n - 1) if _roll_matches_jnp() else (n - 1, 1)

    # -----------------------------------------------------------------------
    # Kernel B: sim/T row-slab on the MXU + fused InfoNCE reorder in the
    # epilogue (positive first, diagonal + positive columns dropped/compacted).
    # For row i (a = i mod bs, p = (i+bs) mod n):
    #   logits[i, 0]           = sim[i, p]
    #   logits[i, c] (c >= 1)  = sim[i, c-1] if c <= a
    #                          = sim[i, c]   if a < c < a+bs
    #                          = sim[i, c+1] if c >= a+bs
    # -----------------------------------------------------------------------
    def _logits_kernel(rows_ref, colsT_ref, out_ref):
        slab = jnp.dot(rows_ref[...], colsT_ref[...],
                       preferred_element_type=jnp.float32)          # (tm, n) == sim / T
        row = pl.program_id(0) * tm + lax.broadcasted_iota(jnp.int32, (tm, n), 0)
        col = lax.broadcasted_iota(jnp.int32, (tm, n), 1)
        a = row % bs                       # smaller dropped column
        p = (row + bs) % n                 # positive column

        prev = pltpu.roll(slab, shift=prev_shift, axis=1)   # prev[:, c] == slab[:, c-1]
        nxt = pltpu.roll(slab, shift=next_shift, axis=1)    # nxt[:, c]  == slab[:, c+1]

        neg = jnp.where(col <= a, prev, jnp.where(col >= a + bs, nxt, slab))
        pos = jnp.sum(jnp.where(col == p, slab, 0.0), axis=1, keepdims=True)  # (tm, 1)
        out = jnp.where(col == 0, pos, neg)                  # col n-1 is junk, dropped below
        out_ref[...] = out[:, : n - 1].astype(out_ref.dtype)

    logits = pl.pallas_call(
        _logits_kernel,
        grid=(n // tm,),
        in_specs=[pl.BlockSpec((tm, e), lambda i: (i, 0)),   # rows tile (N, E)
                  pl.BlockSpec((e, n), lambda i: (0, 0))],   # full cols (E, N), fetched once
        out_specs=pl.BlockSpec((tm, n - 1), lambda i: (i, 0)),
        out_shape=jax.ShapeDtypeStruct((n, n - 1), jnp.float32),
        compiler_params=pltpu.CompilerParams(
            dimension_semantics=("parallel",),
            vmem_limit_bytes=VMEM_LIMIT_BYTES),
    )(normed, normed_t)

    labels = jnp.zeros((n,), dtype=jnp.int32)               # torch.long -> int32
    return logits, labels


def _reference(input_q, input_k, params):
    """Pure-JAX f32 mirror of the PyTorch semantics for verification."""
    x = jnp.concatenate([input_q, input_k], axis=0)
    pooled = jnp.mean(x, axis=1)
    feats = pooled @ params['we'] + params['be']
    if MLP:
        h = jnp.maximum(feats @ params['w1'] + params['b1'], 0.0)
        feats = h @ params['w2'] + params['b2']
    norm = jnp.sqrt(jnp.sum(feats ** 2, axis=1, keepdims=True))
    normed = feats / jnp.maximum(norm, 1e-12)
    sim = normed @ normed.T
    n = x.shape[0]
    bs = n // N_VIEWS
    idx = jnp.asarray(_build_gather_index(n, bs))
    return jnp.take_along_axis(sim, idx, axis=1) / TEMP


if __name__ == "__main__":
    # feat=80 (not a multiple of 128) deliberately exercises the lane-padding path.
    bs, t_frames, feat = 64, 8, 80
    n = N_VIEWS * bs
    e = EMBED_DIM

    key = jax.random.PRNGKey(0)
    kq, kk, k1, k2, k3, k4, k5, k6 = jax.random.split(key, 8)

    input_q = jax.random.normal(kq, (bs, t_frames, feat), dtype=jnp.float32)
    input_k = jax.random.normal(kk, (bs, t_frames, feat), dtype=jnp.float32)

    params = {
        'we': 0.1 * jax.random.normal(k1, (feat, e), dtype=jnp.float32),
        'be': 0.1 * jax.random.normal(k2, (1, e), dtype=jnp.float32),
        'w1': 0.1 * jax.random.normal(k3, (e, e), dtype=jnp.float32),
        'b1': 0.1 * jax.random.normal(k4, (1, e), dtype=jnp.float32),
        'w2': 0.1 * jax.random.normal(k5, (e, e), dtype=jnp.float32),
        'b2': 0.1 * jax.random.normal(k6, (1, e), dtype=jnp.float32),
    }

    logits, labels = simclr_forward(input_q, input_k, params)
    logits = jax.block_until_ready(logits)
    labels = jax.block_until_ready(labels)

    ref_logits = _reference(input_q, input_k, params)
    assert logits.shape == (n, n - 1)
    assert labels.shape == (n,) and labels.dtype == jnp.int32
    # bf16 operands on the sim matmul (f32 accumulate): ~1e-3..1e-2 abs error
    # on logits whose magnitude is <= 1/TEMP (~14.3).
    assert np.allclose(np.asarray(logits), np.asarray(ref_logits),
                       rtol=2e-2, atol=5e-2), "Pallas kernel mismatch vs reference"

    print("KERNEL_OK")
</pallas_src>

<mosaic_0001>
module attributes {stable_mosaic.version = 11 : i64} {
  func.func @_encode_kernel(%arg0: i32, %arg1: memref<32x8x128xf32, #tpu.memory_space<vmem>>, %arg2: memref<32x8x128xf32, #tpu.memory_space<vmem>>, %arg3: memref<128x128xf32, #tpu.memory_space<vmem>>, %arg4: memref<1x128xf32, #tpu.memory_space<vmem>>, %arg5: memref<128x128xf32, #tpu.memory_space<vmem>>, %arg6: memref<1x128xf32, #tpu.memory_space<vmem>>, %arg7: memref<128x128xf32, #tpu.memory_space<vmem>>, %arg8: memref<1x128xf32, #tpu.memory_space<vmem>>, %arg9: memref<2x32x128xbf16, #tpu.memory_space<vmem>>) attributes {dimension_semantics = [#tpu.dimension_semantics<parallel>], iteration_bounds = array<i64: 2>, scalar_prefetch = 0 : i64, scratch_operands = 0 : i64, tpu.core_type = #tpu.core_type<tc>, window_params = [{transform_indices = @transform_0, window_bounds = array<i64: 32, 8, 128>}, {transform_indices = @transform_1, window_bounds = array<i64: 32, 8, 128>}, {pipeline_mode = #tpu.pipeline_mode<synchronous>, transform_indices = @transform_2, window_bounds = array<i64: 128, 128>}, {pipeline_mode = #tpu.pipeline_mode<synchronous>, transform_indices = @transform_3, window_bounds = array<i64: 1, 128>}, {pipeline_mode = #tpu.pipeline_mode<synchronous>, transform_indices = @transform_4, window_bounds = array<i64: 128, 128>}, {pipeline_mode = #tpu.pipeline_mode<synchronous>, transform_indices = @transform_5, window_bounds = array<i64: 1, 128>}, {pipeline_mode = #tpu.pipeline_mode<synchronous>, transform_indices = @transform_6, window_bounds = array<i64: 128, 128>}, {pipeline_mode = #tpu.pipeline_mode<synchronous>, transform_indices = @transform_7, window_bounds = array<i64: 1, 128>}, {transform_indices = @transform_8, window_bounds = array<i64: 2, 32, 128>}]} {
    %c0 = arith.constant 0 : index
    %c0_0 = arith.constant 0 : index
    %c0_1 = arith.constant 0 : index
    %0 = vector.load %arg1[%c0, %c0_0, %c0_1] : memref<32x8x128xf32, #tpu.memory_space<vmem>>, vector<32x8x128xf32>
    %cst = arith.constant dense<0.000000e+00> : vector<32x128xf32>
    %1 = vector.multi_reduction <add>, %0, %cst [1] : vector<32x8x128xf32> to vector<32x128xf32>
    %cst_2 = arith.constant 8.000000e+00 : f32
    %2 = vector.broadcast %cst_2 : f32 to vector<32x128xf32>
    %3 = arith.divf %1, %2 : vector<32x128xf32>
    %c0_3 = arith.constant 0 : index
    %c0_4 = arith.constant 0 : index
    %c0_5 = arith.constant 0 : index
    %4 = vector.load %arg2[%c0_3, %c0_4, %c0_5] : memref<32x8x128xf32, #tpu.memory_space<vmem>>, vector<32x8x128xf32>
    %cst_6 = arith.constant dense<0.000000e+00> : vector<32x128xf32>
    %5 = vector.multi_reduction <add>, %4, %cst_6 [1] : vector<32x8x128xf32> to vector<32x128xf32>
    %cst_7 = arith.constant 8.000000e+00 : f32
    %6 = vector.broadcast %cst_7 : f32 to vector<32x128xf32>
    %7 = arith.divf %5, %6 : vector<32x128xf32>
    %8 = tpu.concatenate %3, %7 in 0 : vector<32x128xf32>, vector<32x128xf32> -> vector<64x128xf32>
    %c0_8 = arith.constant 0 : index
    %c0_9 = arith.constant 0 : index
    %9 = vector.load %arg3[%c0_8, %c0_9] : memref<128x128xf32, #tpu.memory_space<vmem>>, vector<128x128xf32>
    %cst_10 = arith.constant dense<0.000000e+00> : vector<64x128xf32>
    %10 = tpu.matmul %8, %9, %cst_10 {dimension_numbers = #tpu.dot_dimension_numbers<[1], [0], [0], [1], [0, 0, 1, 1], [], []>} : vector<64x128xf32>, vector<128x128xf32>, vector<64x128xf32> -> vector<64x128xf32>
    %c0_11 = arith.constant 0 : index
    %c0_12 = arith.constant 0 : index
    %11 = vector.load %arg4[%c0_11, %c0_12] : memref<1x128xf32, #tpu.memory_space<vmem>>, vector<1x128xf32>
    %12 = vector.broadcast %11 : vector<1x128xf32> to vector<64x128xf32>
    %13 = arith.addf %10, %12 : vector<64x128xf32>
    %c0_13 = arith.constant 0 : index
    %c0_14 = arith.constant 0 : index
    %14 = vector.load %arg5[%c0_13, %c0_14] : memref<128x128xf32, #tpu.memory_space<vmem>>, vector<128x128xf32>
    %cst_15 = arith.constant dense<0.000000e+00> : vector<64x128xf32>
    %15 = tpu.matmul %13, %14, %cst_15 {dimension_numbers = #tpu.dot_dimension_numbers<[1], [0], [0], [1], [0, 0, 1, 1], [], []>} : vector<64x128xf32>, vector<128x128xf32>, vector<64x128xf32> -> vector<64x128xf32>
    %c0_16 = arith.constant 0 : index
    %c0_17 = arith.constant 0 : index
    %16 = vector.load %arg6[%c0_16, %c0_17] : memref<1x128xf32, #tpu.memory_space<vmem>>, vector<1x128xf32>
    %17 = vector.broadcast %16 : vector<1x128xf32> to vector<64x128xf32>
    %18 = arith.addf %15, %17 : vector<64x128xf32>
    %cst_18 = arith.constant 0.000000e+00 : f32
    %19 = vector.broadcast %cst_18 : f32 to vector<64x128xf32>
    %20 = arith.maximumf %18, %19 : vector<64x128xf32>
    %c0_19 = arith.constant 0 : index
    %c0_20 = arith.constant 0 : index
    %21 = vector.load %arg7[%c0_19, %c0_20] : memref<128x128xf32, #tpu.memory_space<vmem>>, vector<128x128xf32>
    %cst_21 = arith.constant dense<0.000000e+00> : vector<64x128xf32>
    %22 = tpu.matmul %20, %21, %cst_21 {dimension_numbers = #tpu.dot_dimension_numbers<[1], [0], [0], [1], [0, 0, 1, 1], [], []>} : vector<64x128xf32>, vector<128x128xf32>, vector<64x128xf32> -> vector<64x128xf32>
    %c0_22 = arith.constant 0 : index
    %c0_23 = arith.constant 0 : index
    %23 = vector.load %arg8[%c0_22, %c0_23] : memref<1x128xf32, #tpu.memory_space<vmem>>, vector<1x128xf32>
    %24 = vector.broadcast %23 : vector<1x128xf32> to vector<64x128xf32>
    %25 = arith.addf %22, %24 : vector<64x128xf32>
    %26 = arith.mulf %25, %25 : vector<64x128xf32>
    %cst_24 = arith.constant dense<0.000000e+00> : vector<64xf32>
    %27 = vector.multi_reduction <add>, %26, %cst_24 [1] : vector<64x128xf32> to vector<64xf32>
    %28 = vector.shape_cast %27 : vector<64xf32> to vector<64x1xf32>
    %cst_25 = arith.constant 1.000000e-24 : f32
    %29 = vector.broadcast %cst_25 : f32 to vector<64x1xf32>
    %30 = arith.maximumf %28, %29 : vector<64x1xf32>
    %31 = math.rsqrt %30 : vector<64x1xf32>
    %cst_26 = arith.constant 3.77964473 : f32
    %32 = vector.broadcast %cst_26 : f32 to vector<64x1xf32>
    %33 = arith.mulf %31, %32 : vector<64x1xf32>
    %34 = vector.broadcast %33 : vector<64x1xf32> to vector<64x128xf32>
    %35 = arith.mulf %25, %34 : vector<64x128xf32>
    %36 = arith.truncf %35 : vector<64x128xf32> to vector<64x128xbf16>
    %37 = vector.extract_strided_slice %36 {offsets = [0, 0], sizes = [32, 128], strides = [1, 1]} : vector<64x128xbf16> to vector<32x128xbf16>
    %c0_27 = arith.constant 0 : index
    %c0_28 = arith.constant 0 : index
    %c0_29 = arith.constant 0 : index
    %38 = vector.load %arg9[%c0_27, %c0_28, %c0_29] : memref<2x32x128xbf16, #tpu.memory_space<vmem>>, vector<1x32x128xbf16>
    %39 = vector.shape_cast %38 : vector<1x32x128xbf16> to vector<32x128xbf16>
    %40 = vector.shape_cast %37 : vector<32x128xbf16> to vector<1x32x128xbf16>
    tpu.vector_store %arg9[%c0_27, %c0_28, %c0_29], %40 {strides = array<i32>} : memref<2x32x128xbf16, #tpu.memory_space<vmem>>, vector<1x32x128xbf16>,
    %41 = vector.extract_strided_slice %36 {offsets = [32, 0], sizes = [32, 128], strides = [1, 1]} : vector<64x128xbf16> to vector<32x128xbf16>
    %c1 = arith.constant 1 : index
    %c0_30 = arith.constant 0 : index
    %c0_31 = arith.constant 0 : index
    %42 = vector.load %arg9[%c1, %c0_30, %c0_31] : memref<2x32x128xbf16, #tpu.memory_space<vmem>>, vector<1x32x128xbf16>
    %43 = vector.shape_cast %42 : vector<1x32x128xbf16> to vector<32x128xbf16>
    %44 = vector.shape_cast %41 : vector<32x128xbf16> to vector<1x32x128xbf16>
    tpu.vector_store %arg9[%c1, %c0_30, %c0_31], %44 {strides = array<i32>} : memref<2x32x128xbf16, #tpu.memory_space<vmem>>, vector<1x32x128xbf16>,
    return
  }
  func.func @transform_0(%arg0: i32) -> (i32, i32, i32) {
    %c0_i32 = arith.constant 0 : i32
    %c0_i32_0 = arith.constant 0 : i32
    %c0_i32_1 = arith.constant 0 : i32
    return %arg0, %c0_i32, %c0_i32_0 : i32, i32, i32
  }
  func.func @transform_1(%arg0: i32) -> (i32, i32, i32) {
    %c0_i32 = arith.constant 0 : i32
    %c0_i32_0 = arith.constant 0 : i32
    %c0_i32_1 = arith.constant 0 : i32
    return %arg0, %c0_i32, %c0_i32_0 : i32, i32, i32
  }
  func.func @transform_2(%arg0: i32) -> (i32, i32) {
    %c0_i32 = arith.constant 0 : i32
    %c0_i32_0 = arith.constant 0 : i32
    %c0_i32_1 = arith.constant 0 : i32
    return %c0_i32, %c0_i32_0 : i32, i32
  }
  func.func @transform_3(%arg0: i32) -> (i32, i32) {
    %c0_i32 = arith.constant 0 : i32
    %c0_i32_0 = arith.constant 0 : i32
    %c0_i32_1 = arith.constant 0 : i32
    return %c0_i32, %c0_i32_0 : i32, i32
  }
  func.func @transform_4(%arg0: i32) -> (i32, i32) {
    %c0_i32 = arith.constant 0 : i32
    %c0_i32_0 = arith.constant 0 : i32
    %c0_i32_1 = arith.constant 0 : i32
    return %c0_i32, %c0_i32_0 : i32, i32
  }
  func.func @transform_5(%arg0: i32) -> (i32, i32) {
    %c0_i32 = arith.constant 0 : i32
    %c0_i32_0 = arith.constant 0 : i32
    %c0_i32_1 = arith.constant 0 : i32
    return %c0_i32, %c0_i32_0 : i32, i32
  }
  func.func @transform_6(%arg0: i32) -> (i32, i32) {
    %c0_i32 = arith.constant 0 : i32
    %c0_i32_0 = arith.constant 0 : i32
    %c0_i32_1 = arith.constant 0 : i32
    return %c0_i32, %c0_i32_0 : i32, i32
  }
  func.func @transform_7(%arg0: i32) -> (i32, i32) {
    %c0_i32 = arith.constant 0 : i32
    %c0_i32_0 = arith.constant 0 : i32
    %c0_i32_1 = arith.constant 0 : i32
    return %c0_i32, %c0_i32_0 : i32, i32
  }
  func.func @transform_8(%arg0: i32) -> (i32, i32, i32) {
    %c0_i32 = arith.constant 0 : i32
    %c0_i32_0 = arith.constant 0 : i32
    %c0_i32_1 = arith.constant 0 : i32
    return %c0_i32, %arg0, %c0_i32_0 : i32, i32, i32
  }
}

</mosaic_0001>

<llo_original>
// kernel: tpu_custom_call.1
$region0: #{tpu_custom_call.1}
  #allocation0 [shape = 'u32[]', space=smem, size = 0x4, offset = 0x4, fixed_abs, tag = 'smem constant byte address 0x4 - core index']
  #allocation1 [shape = 'u32[72,128]{1,0:T(1,128)}', space=vmem, size = 0x9000, scoped, tag = 'internal scratch']
  #allocation12 [shape = 's32[]', space=sflag, size = 0x4, offset = 0, fixed_abs, tag = 'sflag constant byte address 0x0 - dummy sync flag']
  %s0 = inlined_call_operand.hbm [shape: f32[64,8,128], index: 0, kind: input, shape index: {}]
  %s1 = inlined_call_operand.hbm [shape: f32[64,8,128], index: 1, kind: input, shape index: {}]
  %s2 = inlined_call_operand.hbm [shape: f32[128,128], index: 2, kind: input, shape index: {}]
  %s3 = inlined_call_operand.vmem [shape: f32[1,128], index: 3, kind: input, shape index: {}]
  %s4 = inlined_call_operand.hbm [shape: f32[128,128], index: 4, kind: input, shape index: {}]
  %s5 = inlined_call_operand.vmem [shape: f32[1,128], index: 5, kind: input, shape index: {}]
  %s6 = inlined_call_operand.hbm [shape: f32[128,128], index: 6, kind: input, shape index: {}]
  %s7 = inlined_call_operand.vmem [shape: f32[1,128], index: 7, kind: input, shape index: {}]
  %s8 = inlined_call_operand.hbm [shape: bf16[2,64,128], index: 8, kind: output, shape index: {}]
  %s9 = sld [smem:[#allocation0]]
  $region85: #{tpu_custom_call.1} parent=0
    _
  %s11 = ssub.s32 1, %s9
  %s12 = scalar_select 0, %s11, %s9
  $region1: #{tpu_custom_call.1} parent=0
    #allocation2 [shape = 'u8[262144]{0}', space=vmem, size = 0x40000, scoped, tag = 'input window, operand 0']
    #allocation3 [shape = 's32[2]{0}', space=sflag, size = 0x8, scoped, tag = 'scoped memory for tpu_custom_call.1']
    #allocation4 [shape = 's32[2]{0}', space=sflag, size = 0x8, scoped, tag = 'scoped memory for tpu_custom_call.1']
    #allocation5 [shape = 'u8[262144]{0}', space=vmem, size = 0x40000, scoped, tag = 'input window, operand 1']
    #allocation6 [shape = 's32[2]{0}', space=sflag, size = 0x8, scoped, tag = 'scoped memory for tpu_custom_call.1']
    #allocation7 [shape = 'u8[65536]{0}', space=vmem, size = 0x10000, scoped, tag = 'input window, operand 2, single buffered']
    #allocation8 [shape = 'u8[65536]{0}', space=vmem, size = 0x10000, scoped, tag = 'input window, operand 4, single buffered']
    #allocation9 [shape = 's32[1]{0}', space=sflag, size = 0x4, scoped, tag = 'scoped memory for tpu_custom_call.1']
    #allocation10 [shape = 'u8[65536]{0}', space=vmem, size = 0x10000, scoped, tag = 'input window, operand 6, single buffered']
    #allocation11 [shape = 'u8[32768]{0}', space=vmem, size = 0x8000, scoped, tag = 'output window, operand 0']
    %13 = vsyncpa [#allocation3], 0
    %s14 = scalar_lea.sflag [#allocation3], 1
    %15 = vsyncpa %s14, 0
    %16 = vsyncpa [#allocation6], 0
    %s17 = scalar_lea.sflag [#allocation6], 1
    %18 = vsyncpa %s17, 0
    %19 = vsyncpa [#allocation9], 0
    %20 = vsyncpa [#allocation4], 0
    %s21 = scalar_lea.sflag [#allocation4], 1
    %22 = vsyncpa %s21, 0
    loop: start=0, step=1, limit=4
    $region2: #{tpu_custom_call.1} parent=1 // loop_pre_header
      _
    $region3: #{tpu_custom_call.1} parent=1 // loop_header
      %s24 = sphi 0, %s28
      %p25 = scmp.ge.s32.totalorder %s24, 4
      %s34 = sphi 0, %s36
      %s37 = sphi 0, %s34
      %s38 = sphi 0, %s37
      %s54 = sphi 0, %s38
      %s60 = sphi 0, %s62
      %s63 = sphi 0, %s60
      %s64 = sphi 0, %s63
      %s80 = sphi 0, %s64
      %s84 = sphi 0, %s84
      %s86 = sphi 0, %s84
      %s87 = sphi 0, %s86
      %s101 = sphi 0, %s87
      %s105 = sphi 0, %s105
      %s107 = sphi 0, %s105
      %s108 = sphi 0, %s107
      %s122 = sphi 0, %s108
      %s126 = sphi 0, %s126
      %s128 = sphi 0, %s126
      %s129 = sphi 0, %s128
      %s143 = sphi 0, %s129
      %s147 = sphi 0, %s147
      %s149 = sphi 0, %s147
      %s150 = sphi 0, %s149
      %s164 = sphi 0, %s150
      %s168 = sphi 0, %s168
      %s170 = sphi 0, %s168
      %s171 = sphi 0, %s170
      %s185 = sphi 0, %s171
      %s189 = sphi 0, %s189
      %s191 = sphi 0, %s189
      %s192 = sphi 0, %s191
      %s206 = sphi 0, %s192
      %s212 = sphi 0, %s214
      %s215 = sphi 0, %s212
      %s216 = sphi 0, %s215
      %s232 = sphi 0, %s216
    $region4: #{tpu_custom_call.1} parent=1 // loop_header_branch
      %27 = sbr.rel (%p25) target = $region8
    $region5: #{tpu_custom_call.1} parent=1 // loop_body
      %s29 = ssub.s32 %s24, 1
      %s30 = ssub.s32 %s24, 2
      %s31 = sadd.s32 %s24, 1
      %s32 = ssub.s32 %s24, %s31
      %p33 = scmp.eq.s32.totalorder %s32, 0
      %s35 = sadd.s32 %s34, 1
      %s36 = scalar_select %p33, %s34, %s35
      %p39 = pneg %p33
      %p40 = scmp.eq.s32.totalorder %s24, 1
      %p41 = por %p39, %p40
      %p42 = scmp.ne.s32.totalorder %s34, %s37
      %p43 = scmp.eq.s32.totalorder %s24, 0
      %p44 = por %p42, %p43
      %p45 = scmp.ne.s32.totalorder %s34, %s37
      %p46 = scmp.eq.s32.totalorder %s29, 1
      %p47 = por %p45, %p46
      %p48 = scmp.ne.s32.totalorder %s37, %s38
      %p49 = scmp.eq.s32.totalorder %s29, 0
      %p50 = por %p48, %p49
      %p51 = scmp.ne.s32.totalorder %s37, %s38
      %p52 = scmp.eq.s32.totalorder %s30, 1
      %p53 = por %p51, %p52
      %p55 = scmp.ne.s32.totalorder %s38, %s54
      %p56 = scmp.eq.s32.totalorder %s30, 0
      %p57 = por %p55, %p56
      %s58 = ssub.s32 %s24, %s31
      %p59 = scmp.eq.s32.totalorder %s58, 0
      %s61 = sadd.s32 %s60, 1
      %s62 = scalar_select %p59, %s60, %s61
      %p65 = pneg %p59
      %p66 = scmp.eq.s32.totalorder %s24, 1
      %p67 = por %p65, %p66
      %p68 = scmp.ne.s32.totalorder %s60, %s63
      %p69 = scmp.eq.s32.totalorder %s24, 0
      %p70 = por %p68, %p69
      %p71 = scmp.ne.s32.totalorder %s60, %s63
      %p72 = scmp.eq.s32.totalorder %s29, 1
      %p73 = por %p71, %p72
      %p74 = scmp.ne.s32.totalorder %s63, %s64
      %p75 = scmp.eq.s32.totalorder %s29, 0
      %p76 = por %p74, %p75
      %p77 = scmp.ne.s32.totalorder %s63, %s64
      %p78 = scmp.eq.s32.totalorder %s30, 1
      %p79 = por %p77, %p78
      %p81 = scmp.ne.s32.totalorder %s64, %s80
      %p82 = scmp.eq.s32.totalorder %s30, 0
      %p83 = por %p81, %p82
      %s85 = sadd.s32 %s84, 1
      %p88 = scmp.eq.s32.totalorder %s24, 1
      %p89 = scmp.ne.s32.totalorder %s84, %s86
      %p90 = scmp.eq.s32.totalorder %s24, 0
      %p91 = por %p89, %p90
      %p92 = scmp.ne.s32.totalorder %s84, %s86
      %p93 = scmp.eq.s32.totalorder %s29, 1
      %p94 = por %p92, %p93
      %p95 = scmp.ne.s32.totalorder %s86, %s87
      %p96 = scmp.eq.s32.totalorder %s29, 0
      %p97 = por %p95, %p96
      %p98 = scmp.ne.s32.totalorder %s86, %s87
      %p99 = scmp.eq.s32.totalorder %s30, 1
      %p100 = por %p98, %p99
      %p102 = scmp.ne.s32.totalorder %s87, %s101
      %p103 = scmp.eq.s32.totalorder %s30, 0
      %p104 = por %p102, %p103
      %s106 = sadd.s32 %s105, 1
      %p109 = scmp.eq.s32.totalorder %s24, 1
      %p110 = scmp.ne.s32.totalorder %s105, %s107
      %p111 = scmp.eq.s32.totalorder %s24, 0
      %p112 = por %p110, %p111
      %p113 = scmp.ne.s32.totalorder %s105, %s107
      %p114 = scmp.eq.s32.totalorder %s29, 1
      %p115 = por %p113, %p114
      %p116 = scmp.ne.s32.totalorder %s107, %s108
      %p117 = scmp.eq.s32.totalorder %s29, 0
      %p118 = por %p116, %p117
      %p119 = scmp.ne.s32.totalorder %s107, %s108
      %p120 = scmp.eq.s32.totalorder %s30, 1
      %p121 = por %p119, %p120
      %p123 = scmp.ne.s32.totalorder %s108, %s122
      %p124 = scmp.eq.s32.totalorder %s30, 0
      %p125 = por %p123, %p124
      %s127 = sadd.s32 %s126, 1
      %p130 = scmp.eq.s32.totalorder %s24, 1
      %p131 = scmp.ne.s32.totalorder %s126, %s128
      %p132 = scmp.eq.s32.totalorder %s24, 0
      %p133 = por %p131, %p132
      %p134 = scmp.ne.s32.totalorder %s126, %s128
      %p135 = scmp.eq.s32.totalorder %s29, 1
      %p136 = por %p134, %p135
      %p137 = scmp.ne.s32.totalorder %s128, %s129
      %p138 = scmp.eq.s32.totalorder %s29, 0
      %p139 = por %p137, %p138
      %p140 = scmp.ne.s32.totalorder %s128, %s129
      %p141 = scmp.eq.s32.totalorder %s30, 1
      %p142 = por %p140, %p141
      %p144 = scmp.ne.s32.totalorder %s129, %s143
      %p145 = scmp.eq.s32.totalorder %s30, 0
      %p146 = por %p144, %p145
      %s148 = sadd.s32 %s147, 1
      %p151 = scmp.eq.s32.totalorder %s24, 1
      %p152 = scmp.ne.s32.totalorder %s147, %s149
      %p153 = scmp.eq.s32.totalorder %s24, 0
      %p154 = por %p152, %p153
      %p155 = scmp.ne.s32.totalorder %s147, %s149
      %p156 = scmp.eq.s32.totalorder %s29, 1
      %p157 = por %p155, %p156
      %p158 = scmp.ne.s32.totalorder %s149, %s150
      %p159 = scmp.eq.s32.totalorder %s29, 0
      %p160 = por %p158, %p159
      %p161 = scmp.ne.s32.totalorder %s149, %s150
      %p162 = scmp.eq.s32.totalorder %s30, 1
      %p163 = por %p161, %p162
      %p165 = scmp.ne.s32.totalorder %s150, %s164
      %p166 = scmp.eq.s32.totalorder %s30, 0
      %p167 = por %p165, %p166
      %s169 = sadd.s32 %s168, 1
      %p172 = scmp.eq.s32.totalorder %s24, 1
      %p173 = scmp.ne.s32.totalorder %s168, %s170
      %p174 = scmp.eq.s32.totalorder %s24, 0
      %p175 = por %p173, %p174
      %p176 = scmp.ne.s32.totalorder %s168, %s170
      %p177 = scmp.eq.s32.totalorder %s29, 1
      %p178 = por %p176, %p177
      %p179 = scmp.ne.s32.totalorder %s170, %s171
      %p180 = scmp.eq.s32.totalorder %s29, 0
      %p181 = por %p179, %p180
      %p182 = scmp.ne.s32.totalorder %s170, %s171
      %p183 = scmp.eq.s32.totalorder %s30, 1
      %p184 = por %p182, %p183
      %p186 = scmp.ne.s32.totalorder %s171, %s185
      %p187 = scmp.eq.s32.totalorder %s30, 0
      %p188 = por %p186, %p187
      %s190 = sadd.s32 %s189, 1
      %p193 = scmp.eq.s32.totalorder %s24, 1
      %p194 = scmp.ne.s32.totalorder %s189, %s191
      %p195 = scmp.eq.s32.totalorder %s24, 0
      %p196 = por %p194, %p195
      %p197 = scmp.ne.s32.totalorder %s189, %s191
      %p198 = scmp.eq.s32.totalorder %s29, 1
      %p199 = por %p197, %p198
      %p200 = scmp.ne.s32.totalorder %s191, %s192
      %p201 = scmp.eq.s32.totalorder %s29, 0
      %p202 = por %p200, %p201
      %p203 = scmp.ne.s32.totalorder %s191, %s192
      %p204 = scmp.eq.s32.totalorder %s30, 1
      %p205 = por %p203, %p204
      %p207 = scmp.ne.s32.totalorder %s192, %s206
      %p208 = scmp.eq.s32.totalorder %s30, 0
      %p209 = por %p207, %p208
      %s210 = ssub.s32 %s24, %s31
      %p211 = scmp.eq.s32.totalorder %s210, 0
      %s213 = sadd.s32 %s212, 1
      %s214 = scalar_select %p211, %s212, %s213
      %p217 = pneg %p211
      %p218 = scmp.eq.s32.totalorder %s24, 1
      %p219 = por %p217, %p218
      %p220 = scmp.ne.s32.totalorder %s212, %s215
      %p221 = scmp.eq.s32.totalorder %s24, 0
      %p222 = por %p220, %p221
      %p223 = scmp.ne.s32.totalorder %s212, %s215
      %p224 = scmp.eq.s32.totalorder %s29, 1
      %p225 = por %p223, %p224
      %p226 = scmp.ne.s32.totalorder %s215, %s216
      %p227 = scmp.eq.s32.totalorder %s29, 0
      %p228 = por %p226, %p227
      %p229 = scmp.ne.s32.totalorder %s215, %s216
      %p230 = scmp.eq.s32.totalorder %s30, 1
      %p231 = por %p229, %p230
      %p233 = scmp.ne.s32.totalorder %s216, %s232
      %p234 = scmp.eq.s32.totalorder %s30, 0
      %p235 = por %p233, %p234
      %p236 = scmp.le.s32.totalorder 1, %s24
      %p237 = scmp.lt.s32.totalorder %s24, 3
      %p238 = pnand %p236, %p237
      %p239 = pneg %p238
      // Predicated region
      $region9: #{tpu_custom_call.1} parent=5 // pred_check
        _
      $region10: #{tpu_custom_call.1} parent=5 // pred_check_branch
        %241 = sbr.rel (%p238) target = $region12
      $region11: #{tpu_custom_call.1} parent=5 // pred_region
        %s242 = ssub.s32 %s24, 1
        // Predicated region
        $region13: #{tpu_custom_call.1} parent=11 // pred_check
          %p243 = pneg %p97
        $region14: #{tpu_custom_call.1} parent=11 // pred_check_branch
          %245 = sbr.rel (%p243) target = $region16
        $region15: #{tpu_custom_call.1} parent=11 // pred_region
          %247 = vsyncadd [#allocation6], 0
          %s248 = sshll.u32 %s2, 4
          %s249 = int_to_ptr.hbm [resolvable:$true] %s248
          %s250 = sshll.u32 [#allocation7], 4
          %s251 = int_to_ptr.vmem [resolvable:$true] %s250
          %256 = dma.hbm_to_vmem [thread:$0]  %s249, 2048, %s251, [#allocation6], 128, 128, 8
        $region16: #{tpu_custom_call.1} parent=11 // pred_fallthru
          _
        // Predicated region
        $region17: #{tpu_custom_call.1} parent=11 // pred_check
          %p257 = pneg %p118
        $region18: #{tpu_custom_call.1} parent=11 // pred_check_branch
          %259 = sbr.rel (%p257) target = $region20
        $region19: #{tpu_custom_call.1} parent=11 // pred_region
          _
        $region20: #{tpu_custom_call.1} parent=11 // pred_fallthru
          _
        // Predicated region
        $region21: #{tpu_custom_call.1} parent=11 // pred_check
          %p260 = pneg %p139
        $region22: #{tpu_custom_call.1} parent=11 // pred_check_branch
          %262 = sbr.rel (%p260) target = $region24
        $region23: #{tpu_custom_call.1} parent=11 // pred_region
          %264 = vsyncadd [#allocation9], 0
          %s265 = sshll.u32 %s4, 4
          %s266 = int_to_ptr.hbm [resolvable:$true] %s265
          %s267 = sshll.u32 [#allocation8], 4
          %s268 = int_to_ptr.vmem [resolvable:$true] %s267
          %273 = dma.hbm_to_vmem [thread:$0]  %s266, 2048, %s268, [#allocation9], 128, 128, 8
        $region24: #{tpu_custom_call.1} parent=11 // pred_fallthru
          _
        // Predicated region
        $region25: #{tpu_custom_call.1} parent=11 // pred_check
          %p274 = pneg %p160
        $region26: #{tpu_custom_call.1} parent=11 // pred_check_branch
          %276 = sbr.rel (%p274) target = $region28
        $region27: #{tpu_custom_call.1} parent=11 // pred_region
          _
        $region28: #{tpu_custom_call.1} parent=11 // pred_fallthru
          _
        // Predicated region
        $region29: #{tpu_custom_call.1} parent=11 // pred_check
          %p277 = pneg %p181
        $region30: #{tpu_custom_call.1} parent=11 // pred_check_branch
          %279 = sbr.rel (%p277) target = $region32
        $region31: #{tpu_custom_call.1} parent=11 // pred_region
          %281 = vsyncadd [#allocation9], 0
          %s282 = sshll.u32 %s6, 4
          %s283 = int_to_ptr.hbm [resolvable:$true] %s282
          %s284 = sshll.u32 [#allocation10], 4
          %s285 = int_to_ptr.vmem [resolvable:$true] %s284
          %290 = dma.hbm_to_vmem [thread:$0]  %s283, 2048, %s285, [#allocation9], 128, 128, 8
        $region32: #{tpu_custom_call.1} parent=11 // pred_fallthru
          _
        // Predicated region
        $region33: #{tpu_custom_call.1} parent=11 // pred_check
          %p291 = pneg %p202
        $region34: #{tpu_custom_call.1} parent=11 // pred_check_branch
          %293 = sbr.rel (%p291) target = $region36
        $region35: #{tpu_custom_call.1} parent=11 // pred_region
          _
        $region36: #{tpu_custom_call.1} parent=11 // pred_fallthru
          _
      $region12: #{tpu_custom_call.1} parent=5 // pred_fallthru
        _
      %p294 = scmp.lt.s32.totalorder %s24, 2
      // Predicated region
      $region37: #{tpu_custom_call.1} parent=5 // pred_check
        %p295 = pneg %p294
      $region38: #{tpu_custom_call.1} parent=5 // pred_check_branch
        %297 = sbr.rel (%p295) target = $region40
      $region39: #{tpu_custom_call.1} parent=5 // pred_region
        // Predicated region
        $region41: #{tpu_custom_call.1} parent=39 // pred_check
          %p298 = pneg %p44
        $region42: #{tpu_custom_call.1} parent=39 // pred_check_branch
          %300 = sbr.rel (%p298) target = $region44
        $region43: #{tpu_custom_call.1} parent=39 // pred_region
          %s301 = sand.u32 %s34, 1
          %s302 = scalar_lea.sflag [#allocation3], %s301
          %s303 = sand.u32 %s34, 1
          %s304 = smul.addr %s303, 256
          %s305 = scalar_lea.vmem [#allocation2], %s304
          %s306 = smul.u32 32, %s24
          %308 = vsyncadd %s302, 0
          %s309 = smul.addr %s306, 8
          %s310 = scalar_lea.hbm %s0, %s309
          %s311 = sshll.u32 %s310, 4
          %s312 = int_to_ptr.hbm [resolvable:$true] %s311
          %s313 = sshll.u32 %s305, 4
          %s314 = int_to_ptr.vmem [resolvable:$true] %s313
          %319 = dma.hbm_to_vmem [thread:$0]  %s312, 4096, %s314, %s302, 128, 128, 8
        $region44: #{tpu_custom_call.1} parent=39 // pred_fallthru
          _
        // Predicated region
        $region45: #{tpu_custom_call.1} parent=39 // pred_check
          %p320 = pneg %p70
        $region46: #{tpu_custom_call.1} parent=39 // pred_check_branch
          %322 = sbr.rel (%p320) target = $region48
        $region47: #{tpu_custom_call.1} parent=39 // pred_region
          %s323 = sand.u32 %s24, 1
          %s324 = scalar_lea.sflag [#allocation6], %s323
          %s325 = sand.u32 %s60, 1
          %s326 = smul.addr %s325, 256
          %s327 = scalar_lea.vmem [#allocation5], %s326
          %s328 = smul.u32 32, %s24
          %330 = vsyncadd %s324, 0
          %s331 = smul.addr %s328, 8
          %s332 = scalar_lea.hbm %s1, %s331
          %s333 = sshll.u32 %s332, 4
          %s334 = int_to_ptr.hbm [resolvable:$true] %s333
          %s335 = sshll.u32 %s327, 4
          %s336 = int_to_ptr.vmem [resolvable:$true] %s335
          %341 = dma.hbm_to_vmem [thread:$0]  %s334, 4096, %s336, %s324, 128, 128, 8
        $region48: #{tpu_custom_call.1} parent=39 // pred_fallthru
          _
      $region40: #{tpu_custom_call.1} parent=5 // pred_fallthru
        _
      %p342 = scmp.le.s32.totalorder 1, %s24
      %p343 = scmp.lt.s32.totalorder %s24, 3
      %p344 = pnand %p342, %p343
      %p345 = pneg %p344
      // Predicated region
      $region49: #{tpu_custom_call.1} parent=5 // pred_check
        _
      $region50: #{tpu_custom_call.1} parent=5 // pred_check_branch
        %347 = sbr.rel (%p344) target = $region52
      $region51: #{tpu_custom_call.1} parent=5 // pred_region
        %s348 = ssub.s32 %s24, 1
        %s349 = sand.u32 %s37, 1
        %s350 = scalar_lea.sflag [#allocation3], %s349
        %s351 = sand.u32 %s37, 1
        %s352 = smul.addr %s351, 256
        %s353 = scalar_lea.vmem [#allocation2], %s352
        // Predicated region
        $region53: #{tpu_custom_call.1} parent=51 // pred_check
          %p354 = pneg %p50
        $region54: #{tpu_custom_call.1} parent=51 // pred_check_branch
          %356 = sbr.rel (%p354) target = $region56
        $region55: #{tpu_custom_call.1} parent=51 // pred_region
          %358 = dma.done %s350, 4096
        $region56: #{tpu_custom_call.1} parent=51 // pred_fallthru
          _
        %s359 = sand.u32 %s29, 1
        %s360 = scalar_lea.sflag [#allocation6], %s359
        %s361 = sand.u32 %s63, 1
        %s362 = smul.addr %s361, 256
        %s363 = scalar_lea.vmem [#allocation5], %s362
        // Predicated region
        $region57: #{tpu_custom_call.1} parent=51 // pred_check
          %p364 = pneg %p76
        $region58: #{tpu_custom_call.1} parent=51 // pred_check_branch
          %366 = sbr.rel (%p364) target = $region60
        $region59: #{tpu_custom_call.1} parent=51 // pred_region
          %368 = dma.done %s360, 4096
        $region60: #{tpu_custom_call.1} parent=51 // pred_fallthru
          _
        // Predicated region
        $region61: #{tpu_custom_call.1} parent=51 // pred_check
          %p369 = pneg %p97
        $region62: #{tpu_custom_call.1} parent=51 // pred_check_branch
          %371 = sbr.rel (%p369) target = $region64
        $region63: #{tpu_custom_call.1} parent=51 // pred_region
          %373 = dma.done [#allocation6], 2048
        $region64: #{tpu_custom_call.1} parent=51 // pred_fallthru
          _
        // Predicated region
        $region65: #{tpu_custom_call.1} parent=51 // pred_check
          %p374 = pneg %p139
        $region66: #{tpu_custom_call.1} parent=51 // pred_check_branch
          %376 = sbr.rel (%p374) target = $region68
        $region67: #{tpu_custom_call.1} parent=51 // pred_region
          %378 = dma.done [#allocation9], 2048
        $region68: #{tpu_custom_call.1} parent=51 // pred_fallthru
          _
        // Predicated region
        $region69: #{tpu_custom_call.1} parent=51 // pred_check
          %p379 = pneg %p181
        $region70: #{tpu_custom_call.1} parent=51 // pred_check_branch
          %381 = sbr.rel (%p379) target = $region72
        $region71: #{tpu_custom_call.1} parent=51 // pred_region
          %383 = dma.done [#allocation9], 2048
        $region72: #{tpu_custom_call.1} parent=51 // pred_fallthru
          _
        %s384 = sand.u32 %s37, 1
        %s385 = scalar_lea.sflag [#allocation3], %s384
        %s386 = sand.u32 %s37, 1
        %s387 = smul.addr %s386, 256
        %s388 = scalar_lea.vmem [#allocation2], %s387
        %p389 = pneg %p50
        %p390 = pneg %p47
        %s391 = sand.u32 %s29, 1
        %s392 = scalar_lea.sflag [#allocation6], %s391
        %s393 = sand.u32 %s63, 1
        %s394 = smul.addr %s393, 256
        %s395 = scalar_lea.vmem [#allocation5], %s394
        %p396 = pneg %p76
        %p397 = pneg %p73
        %p398 = pneg %p97
        %p399 = pneg %p94
        %p400 = pneg %p118
        %p401 = pneg %p115
        %p402 = pneg %p139
        %p403 = pneg %p136
        %p404 = pneg %p160
        %p405 = pneg %p157
        %p406 = pneg %p181
        %p407 = pneg %p178
        %p408 = pneg %p202
        %p409 = pneg %p199
        %p410 = pneg %p228
        %p411 = pneg %p225
        %s412 = sand.u32 %s215, 1
        %s413 = scalar_lea.sflag [#allocation4], %s412
        %s414 = sand.u32 %s215, 1
        %s415 = smul.addr %s414, 32
        %s416 = scalar_lea.vmem [#allocation11], %s415
        %s417 = smul.u32 32, %s29
        %s418 = smul.u32 32, %s29
        %s419 = smul.u32 4, %s29
        %v420 = vld [vmem:[%s353] sm:$0xff]
        %v421 = vld [vmem:[%s353 + $0x8] sm:$0xff]
        %v422 = vld [vmem:[%s353 + $0x10] sm:$0xff]
        %v423 = vld [vmem:[%s353 + $0x18] sm:$0xff]
        %v424 = vld [vmem:[%s353 + $0x20] sm:$0xff]
        %v425 = vld [vmem:[%s353 + $0x28] sm:$0xff]
        %v426 = vld [vmem:[%s353 + $0x30] sm:$0xff]
        %v427 = vld [vmem:[%s353 + $0x38] sm:$0xff]
        %v428 = vld [vmem:[%s353 + $0x40] sm:$0xff]
        %v429 = vld [vmem:[%s353 + $0x48] sm:$0xff]
        %v430 = vld [vmem:[%s353 + $0x50] sm:$0xff]
        %v431 = vld [vmem:[%s353 + $0x58] sm:$0xff]
        %v432 = vld [vmem:[%s353 + $0x60] sm:$0xff]
        %v433 = vld [vmem:[%s353 + $0x68] sm:$0xff]
        %v434 = vld [vmem:[%s353 + $0x70] sm:$0xff]
        %v435 = vld [vmem:[%s353 + $0x78] sm:$0xff]
        %v436 = vld [vmem:[%s353 + $0x80] sm:$0xff]
        %v437 = vld [vmem:[%s353 + $0x88] sm:$0xff]
        %v438 = vld [vmem:[%s353 + $0x90] sm:$0xff]
        %v439 = vld [vmem:[%s353 + $0x98] sm:$0xff]
        %v440 = vld [vmem:[%s353 + $0xa0] sm:$0xff]
        %v441 = vld [vmem:[%s353 + $0xa8] sm:$0xff]
        %v442 = vld [vmem:[%s353 + $0xb0] sm:$0xff]
        %v443 = vld [vmem:[%s353 + $0xb8] sm:$0xff]
        %v444 = vld [vmem:[%s353 + $0xc0] sm:$0xff]
        %v445 = vld [vmem:[%s353 + $0xc8] sm:$0xff]
        %v446 = vld [vmem:[%s353 + $0xd0] sm:$0xff]
        %v447 = vld [vmem:[%s353 + $0xd8] sm:$0xff]
        %v448 = vld [vmem:[%s353 + $0xe0] sm:$0xff]
        %v449 = vld [vmem:[%s353 + $0xe8] sm:$0xff]
        %v450 = vld [vmem:[%s353 + $0xf0] sm:$0xff]
        %v451 = vld [vmem:[%s353 + $0xf8] sm:$0xff]
        %v452 = vrot.slane %v420, 4
        %v453 = vadd.f32 %v420, %v452
        %v454 = vrot.slane %v453, 2
        %v455 = vadd.f32 %v453, %v454
        %v456 = vrot.slane %v455, 1
        %v457 = vadd.f32 %v455, %v456
        %v458 = vrot.slane %v421, 4
        %v459 = vadd.f32 %v421, %v458
        %v460 = vrot.slane %v459, 2
        %v461 = vadd.f32 %v459, %v460
        %v462 = vrot.slane %v461, 1
        %v463 = vadd.f32 %v461, %v462
        %v464 = vrot.slane %v422, 4
        %v465 = vadd.f32 %v422, %v464
        %v466 = vrot.slane %v465, 2
        %v467 = vadd.f32 %v465, %v466
        %v468 = vrot.slane %v467, 1
        %v469 = vadd.f32 %v467, %v468
        %v470 = vrot.slane %v423, 4
        %v471 = vadd.f32 %v423, %v470
        %v472 = vrot.slane %v471, 2
        %v473 = vadd.f32 %v471, %v472
        %v474 = vrot.slane %v473, 1
        %v475 = vadd.f32 %v473, %v474
        %v476 = vrot.slane %v424, 4
        %v477 = vadd.f32 %v424, %v476
        %v478 = vrot.slane %v477, 2
        %v479 = vadd.f32 %v477, %v478
        %v480 = vrot.slane %v479, 1
        %v481 = vadd.f32 %v479, %v480
        %v482 = vrot.slane %v425, 4
        %v483 = vadd.f32 %v425, %v482
        %v484 = vrot.slane %v483, 2
        %v485 = vadd.f32 %v483, %v484
        %v486 = vrot.slane %v485, 1
        %v487 = vadd.f32 %v485, %v486
        %v488 = vrot.slane %v426, 4
        %v489 = vadd.f32 %v426, %v488
        %v490 = vrot.slane %v489, 2
        %v491 = vadd.f32 %v489, %v490
        %v492 = vrot.slane %v491, 1
        %v493 = vadd.f32 %v491, %v492
        %v494 = vrot.slane %v427, 4
        %v495 = vadd.f32 %v427, %v494
        %v496 = vrot.slane %v495, 2
        %v497 = vadd.f32 %v495, %v496
        %v498 = vrot.slane %v497, 1
        %v499 = vadd.f32 %v497, %v498
        %v500 = vrot.slane %v428, 4
        %v501 = vadd.f32 %v428, %v500
        %v502 = vrot.slane %v501, 2
        %v503 = vadd.f32 %v501, %v502
        %v504 = vrot.slane %v503, 1
        %v505 = vadd.f32 %v503, %v504
        %v506 = vrot.slane %v429, 4
        %v507 = vadd.f32 %v429, %v506
        %v508 = vrot.slane %v507, 2
        %v509 = vadd.f32 %v507, %v508
        %v510 = vrot.slane %v509, 1
        %v511 = vadd.f32 %v509, %v510
        %v512 = vrot.slane %v430, 4
        %v513 = vadd.f32 %v430, %v512
        %v514 = vrot.slane %v513, 2
        %v515 = vadd.f32 %v513, %v514
        %v516 = vrot.slane %v515, 1
        %v517 = vadd.f32 %v515, %v516
        %v518 = vrot.slane %v431, 4
        %v519 = vadd.f32 %v431, %v518
        %v520 = vrot.slane %v519, 2
        %v521 = vadd.f32 %v519, %v520
        %v522 = vrot.slane %v521, 1
        %v523 = vadd.f32 %v521, %v522
        %v524 = vrot.slane %v432, 4
        %v525 = vadd.f32 %v432, %v524
        %v526 = vrot.slane %v525, 2
        %v527 = vadd.f32 %v525, %v526
        %v528 = vrot.slane %v527, 1
        %v529 = vadd.f32 %v527, %v528
        %v530 = vrot.slane %v433, 4
        %v531 = vadd.f32 %v433, %v530
        %v532 = vrot.slane %v531, 2
        %v533 = vadd.f32 %v531, %v532
        %v534 = vrot.slane %v533, 1
        %v535 = vadd.f32 %v533, %v534
        %v536 = vrot.slane %v434, 4
        %v537 = vadd.f32 %v434, %v536
        %v538 = vrot.slane %v537, 2
        %v539 = vadd.f32 %v537, %v538
        %v540 = vrot.slane %v539, 1
        %v541 = vadd.f32 %v539, %v540
        %v542 = vrot.slane %v435, 4
        %v543 = vadd.f32 %v435, %v542
        %v544 = vrot.slane %v543, 2
        %v545 = vadd.f32 %v543, %v544
        %v546 = vrot.slane %v545, 1
        %v547 = vadd.f32 %v545, %v546
        %v548 = vrot.slane %v436, 4
        %v549 = vadd.f32 %v436, %v548
        %v550 = vrot.slane %v549, 2
        %v551 = vadd.f32 %v549, %v550
        %v552 = vrot.slane %v551, 1
        %v553 = vadd.f32 %v551, %v552
        %v554 = vrot.slane %v437, 4
        %v555 = vadd.f32 %v437, %v554
        %v556 = vrot.slane %v555, 2
        %v557 = vadd.f32 %v555, %v556
        %v558 = vrot.slane %v557, 1
        %v559 = vadd.f32 %v557, %v558
        %v560 = vrot.slane %v438, 4
        %v561 = vadd.f32 %v438, %v560
        %v562 = vrot.slane %v561, 2
        %v563 = vadd.f32 %v561, %v562
        %v564 = vrot.slane %v563, 1
        %v565 = vadd.f32 %v563, %v564
        %v566 = vrot.slane %v439, 4
        %v567 = vadd.f32 %v439, %v566
        %v568 = vrot.slane %v567, 2
        %v569 = vadd.f32 %v567, %v568
        %v570 = vrot.slane %v569, 1
        %v571 = vadd.f32 %v569, %v570
        %v572 = vrot.slane %v440, 4
        %v573 = vadd.f32 %v440, %v572
        %v574 = vrot.slane %v573, 2
        %v575 = vadd.f32 %v573, %v574
        %v576 = vrot.slane %v575, 1
        %v577 = vadd.f32 %v575, %v576
        %v578 = vrot.slane %v441, 4
        %v579 = vadd.f32 %v441, %v578
        %v580 = vrot.slane %v579, 2
        %v581 = vadd.f32 %v579, %v580
        %v582 = vrot.slane %v581, 1
        %v583 = vadd.f32 %v581, %v582
        %v584 = vrot.slane %v442, 4
        %v585 = vadd.f32 %v442, %v584
        %v586 = vrot.slane %v585, 2
        %v587 = vadd.f32 %v585, %v586
        %v588 = vrot.slane %v587, 1
        %v589 = vadd.f32 %v587, %v588
        %v590 = vrot.slane %v443, 4
        %v591 = vadd.f32 %v443, %v590
        %v592 = vrot.slane %v591, 2
        %v593 = vadd.f32 %v591, %v592
        %v594 = vrot.slane %v593, 1
        %v595 = vadd.f32 %v593, %v594
        %v596 = vrot.slane %v444, 4
        %v597 = vadd.f32 %v444, %v596
        %v598 = vrot.slane %v597, 2
        %v599 = vadd.f32 %v597, %v598
        %v600 = vrot.slane %v599, 1
        %v601 = vadd.f32 %v599, %v600
        %v602 = vrot.slane %v445, 4
        %v603 = vadd.f32 %v445, %v602
        %v604 = vrot.slane %v603, 2
        %v605 = vadd.f32 %v603, %v604
        %v606 = vrot.slane %v605, 1
        %v607 = vadd.f32 %v605, %v606
        %v608 = vrot.slane %v446, 4
        %v609 = vadd.f32 %v446, %v608
        %v610 = vrot.slane %v609, 2
        %v611 = vadd.f32 %v609, %v610
        %v612 = vrot.slane %v611, 1
        %v613 = vadd.f32 %v611, %v612
        %v614 = vrot.slane %v447, 4
        %v615 = vadd.f32 %v447, %v614
        %v616 = vrot.slane %v615, 2
        %v617 = vadd.f32 %v615, %v616
        %v618 = vrot.slane %v617, 1
        %v619 = vadd.f32 %v617, %v618
        %v620 = vrot.slane %v448, 4
        %v621 = vadd.f32 %v448, %v620
        %v622 = vrot.slane %v621, 2
        %v623 = vadd.f32 %v621, %v622
        %v624 = vrot.slane %v623, 1
        %v625 = vadd.f32 %v623, %v624
        %v626 = vrot.slane %v449, 4
        %v627 = vadd.f32 %v449, %v626
        %v628 = vrot.slane %v627, 2
        %v629 = vadd.f32 %v627, %v628
        %v630 = vrot.slane %v629, 1
        %v631 = vadd.f32 %v629, %v630
        %v632 = vrot.slane %v450, 4
        %v633 = vadd.f32 %v450, %v632
        %v634 = vrot.slane %v633, 2
        %v635 = vadd.f32 %v633, %v634
        %v636 = vrot.slane %v635, 1
        %v637 = vadd.f32 %v635, %v636
        %v638 = vrot.slane %v451, 4
        %v639 = vadd.f32 %v451, %v638
        %v640 = vrot.slane %v639, 2
        %v641 = vadd.f32 %v639, %v640
        %v642 = vrot.slane %v641, 1
        %v643 = vadd.f32 %v641, %v642
        %v644 = vrcp.pop 8.0
        %v645 = vmul.f32 8.0, %v644
        %v646 = vsub.f32 1.0, %v645
        %v647 = vmul.f32 %v644, %v646
        %v648 = vadd.f32 %v644, %v647
        %vm649 = vweird.f32 %v644
        %v650 = vsel %vm649, %v644, %v648
        %v651 = vmul.f32 %v457, %v650
        %v652 = vmul.f32 %v463, %v650
        %v653 = vmul.f32 %v469, %v650
        %v654 = vmul.f32 %v475, %v650
        %v655 = vmul.f32 %v481, %v650
        %v656 = vmul.f32 %v487, %v650
        %v657 = vmul.f32 %v493, %v650
        %v658 = vmul.f32 %v499, %v650
        %v659 = vmul.f32 %v505, %v650
        %v660 = vmul.f32 %v511, %v650
        %v661 = vmul.f32 %v517, %v650
        %v662 = vmul.f32 %v523, %v650
        %v663 = vmul.f32 %v529, %v650
        %v664 = vmul.f32 %v535, %v650
        %v665 = vmul.f32 %v541, %v650
        %v666 = vmul.f32 %v547, %v650
        %v667 = vmul.f32 %v553, %v650
        %v668 = vmul.f32 %v559, %v650
        %v669 = vmul.f32 %v565, %v650
        %v670 = vmul.f32 %v571, %v650
        %v671 = vmul.f32 %v577, %v650
        %v672 = vmul.f32 %v583, %v650
        %v673 = vmul.f32 %v589, %v650
        %v674 = vmul.f32 %v595, %v650
        %v675 = vmul.f32 %v601, %v650
        %v676 = vmul.f32 %v607, %v650
        %v677 = vmul.f32 %v613, %v650
        %v678 = vmul.f32 %v619, %v650
        %v679 = vmul.f32 %v625, %v650
        %v680 = vmul.f32 %v631, %v650
        %v681 = vmul.f32 %v637, %v650
        %v682 = vmul.f32 %v643, %v650
        %v683 = vld [vmem:[%s363] sm:$0xff]
        %v684 = vld [vmem:[%s363 + $0x8] sm:$0xff]
        %v685 = vld [vmem:[%s363 + $0x10] sm:$0xff]
        %v686 = vld [vmem:[%s363 + $0x18] sm:$0xff]
        %v687 = vld [vmem:[%s363 + $0x20] sm:$0xff]
        %v688 = vld [vmem:[%s363 + $0x28] sm:$0xff]
        %v689 = vld [vmem:[%s363 + $0x30] sm:$0xff]
        %v690 = vld [vmem:[%s363 + $0x38] sm:$0xff]
        %v691 = vld [vmem:[%s363 + $0x40] sm:$0xff]
        %v692 = vld [vmem:[%s363 + $0x48] sm:$0xff]
        %v693 = vld [vmem:[%s363 + $0x50] sm:$0xff]
        %v694 = vld [vmem:[%s363 + $0x58] sm:$0xff]
        %v695 = vld [vmem:[%s363 + $0x60] sm:$0xff]
        %v696 = vld [vmem:[%s363 + $0x68] sm:$0xff]
        %v697 = vld [vmem:[%s363 + $0x70] sm:$0xff]
        %v698 = vld [vmem:[%s363 + $0x78] sm:$0xff]
        %v699 = vld [vmem:[%s363 + $0x80] sm:$0xff]
        %v700 = vld [vmem:[%s363 + $0x88] sm:$0xff]
        %v701 = vld [vmem:[%s363 + $0x90] sm:$0xff]
        %v702 = vld [vmem:[%s363 + $0x98] sm:$0xff]
        %v703 = vld [vmem:[%s363 + $0xa0] sm:$0xff]
        %v704 = vld [vmem:[%s363 + $0xa8] sm:$0xff]
        %v705 = vld [vmem:[%s363 + $0xb0] sm:$0xff]
        %v706 = vld [vmem:[%s363 + $0xb8] sm:$0xff]
        %v707 = vld [vmem:[%s363 + $0xc0] sm:$0xff]
        %v708 = vld [vmem:[%s363 + $0xc8] sm:$0xff]
        %v709 = vld [vmem:[%s363 + $0xd0] sm:$0xff]
        %v710 = vld [vmem:[%s363 + $0xd8] sm:$0xff]
        %v711 = vld [vmem:[%s363 + $0xe0] sm:$0xff]
        %v712 = vld [vmem:[%s363 + $0xe8] sm:$0xff]
        %v713 = vld [vmem:[%s363 + $0xf0] sm:$0xff]
        %v714 = vld [vmem:[%s363 + $0xf8] sm:$0xff]
        %v715 = vrot.slane %v683, 4
        %v716 = vadd.f32 %v683, %v715
        %v717 = vrot.slane %v716, 2
        %v718 = vadd.f32 %v716, %v717
        %v719 = vrot.slane %v718, 1
        %v720 = vadd.f32 %v718, %v719
        %v721 = vrot.slane %v684, 4
        %v722 = vadd.f32 %v684, %v721
        %v723 = vrot.slane %v722, 2
        %v724 = vadd.f32 %v722, %v723
        %v725 = vrot.slane %v724, 1
        %v726 = vadd.f32 %v724, %v725
        %v727 = vrot.slane %v685, 4
        %v728 = vadd.f32 %v685, %v727
        %v729 = vrot.slane %v728, 2
        %v730 = vadd.f32 %v728, %v729
        %v731 = vrot.slane %v730, 1
        %v732 = vadd.f32 %v730, %v731
        %v733 = vrot.slane %v686, 4
        %v734 = vadd.f32 %v686, %v733
        %v735 = vrot.slane %v734, 2
        %v736 = vadd.f32 %v734, %v735
        %v737 = vrot.slane %v736, 1
        %v738 = vadd.f32 %v736, %v737
        %v739 = vrot.slane %v687, 4
        %v740 = vadd.f32 %v687, %v739
        %v741 = vrot.slane %v740, 2
        %v742 = vadd.f32 %v740, %v741
        %v743 = vrot.slane %v742, 1
        %v744 = vadd.f32 %v742, %v743
        %v745 = vrot.slane %v688, 4
        %v746 = vadd.f32 %v688, %v745
        %v747 = vrot.slane %v746, 2
        %v748 = vadd.f32 %v746, %v747
        %v749 = vrot.slane %v748, 1
        %v750 = vadd.f32 %v748, %v749
        %v751 = vrot.slane %v689, 4
        %v752 = vadd.f32 %v689, %v751
        %v753 = vrot.slane %v752, 2
        %v754 = vadd.f32 %v752, %v753
        %v755 = vrot.slane %v754, 1
        %v756 = vadd.f32 %v754, %v755
        %v757 = vrot.slane %v690, 4
        %v758 = vadd.f32 %v690, %v757
        %v759 = vrot.slane %v758, 2
        %v760 = vadd.f32 %v758, %v759
        %v761 = vrot.slane %v760, 1
        %v762 = vadd.f32 %v760, %v761
        %v763 = vrot.slane %v691, 4
        %v764 = vadd.f32 %v691, %v763
        %v765 = vrot.slane %v764, 2
        %v766 = vadd.f32 %v764, %v765
        %v767 = vrot.slane %v766, 1
        %v768 = vadd.f32 %v766, %v767
        %v769 = vrot.slane %v692, 4
        %v770 = vadd.f32 %v692, %v769
        %v771 = vrot.slane %v770, 2
        %v772 = vadd.f32 %v770, %v771
        %v773 = vrot.slane %v772, 1
        %v774 = vadd.f32 %v772, %v773
        %v775 = vrot.slane %v693, 4
        %v776 = vadd.f32 %v693, %v775
        %v777 = vrot.slane %v776, 2
        %v778 = vadd.f32 %v776, %v777
        %v779 = vrot.slane %v778, 1
        %v780 = vadd.f32 %v778, %v779
        %v781 = vrot.slane %v694, 4
        %v782 = vadd.f32 %v694, %v781
        %v783 = vrot.slane %v782, 2
        %v784 = vadd.f32 %v782, %v783
        %v785 = vrot.slane %v784, 1
        %v786 = vadd.f32 %v784, %v785
        %v787 = vrot.slane %v695, 4
        %v788 = vadd.f32 %v695, %v787
        %v789 = vrot.slane %v788, 2
        %v790 = vadd.f32 %v788, %v789
        %v791 = vrot.slane %v790, 1
        %v792 = vadd.f32 %v790, %v791
        %v793 = vrot.slane %v696, 4
        %v794 = vadd.f32 %v696, %v793
        %v795 = vrot.slane %v794, 2
        %v796 = vadd.f32 %v794, %v795
        %v797 = vrot.slane %v796, 1
        %v798 = vadd.f32 %v796, %v797
        %v799 = vrot.slane %v697, 4
        %v800 = vadd.f32 %v697, %v799
        %v801 = vrot.slane %v800, 2
        %v802 = vadd.f32 %v800, %v801
        %v803 = vrot.slane %v802, 1
        %v804 = vadd.f32 %v802, %v803
        %v805 = vrot.slane %v698, 4
        %v806 = vadd.f32 %v698, %v805
        %v807 = vrot.slane %v806, 2
        %v808 = vadd.f32 %v806, %v807
        %v809 = vrot.slane %v808, 1
        %v810 = vadd.f32 %v808, %v809
        %v811 = vrot.slane %v699, 4
        %v812 = vadd.f32 %v699, %v811
        %v813 = vrot.slane %v812, 2
        %v814 = vadd.f32 %v812, %v813
        %v815 = vrot.slane %v814, 1
        %v816 = vadd.f32 %v814, %v815
        %v817 = vrot.slane %v700, 4
        %v818 = vadd.f32 %v700, %v817
        %v819 = vrot.slane %v818, 2
        %v820 = vadd.f32 %v818, %v819
        %v821 = vrot.slane %v820, 1
        %v822 = vadd.f32 %v820, %v821
        %v823 = vrot.slane %v701, 4
        %v824 = vadd.f32 %v701, %v823
        %v825 = vrot.slane %v824, 2
        %v826 = vadd.f32 %v824, %v825
        %v827 = vrot.slane %v826, 1
        %v828 = vadd.f32 %v826, %v827
        %v829 = vrot.slane %v702, 4
        %v830 = vadd.f32 %v702, %v829
        %v831 = vrot.slane %v830, 2
        %v832 = vadd.f32 %v830, %v831
        %v833 = vrot.slane %v832, 1
        %v834 = vadd.f32 %v832, %v833
        %v835 = vrot.slane %v703, 4
        %v836 = vadd.f32 %v703, %v835
        %v837 = vrot.slane %v836, 2
        %v838 = vadd.f32 %v836, %v837
        %v839 = vrot.slane %v838, 1
        %v840 = vadd.f32 %v838, %v839
        %v841 = vrot.slane %v704, 4
        %v842 = vadd.f32 %v704, %v841
        %v843 = vrot.slane %v842, 2
        %v844 = vadd.f32 %v842, %v843
        %v845 = vrot.slane %v844, 1
        %v846 = vadd.f32 %v844, %v845
        %v847 = vrot.slane %v705, 4
        %v848 = vadd.f32 %v705, %v847
        %v849 = vrot.slane %v848, 2
        %v850 = vadd.f32 %v848, %v849
        %v851 = vrot.slane %v850, 1
        %v852 = vadd.f32 %v850, %v851
        %v853 = vrot.slane %v706, 4
        %v854 = vadd.f32 %v706, %v853
        %v855 = vrot.slane %v854, 2
        %v856 = vadd.f32 %v854, %v855
        %v857 = vrot.slane %v856, 1
        %v858 = vadd.f32 %v856, %v857
        %v859 = vrot.slane %v707, 4
        %v860 = vadd.f32 %v707, %v859
        %v861 = vrot.slane %v860, 2
        %v862 = vadd.f32 %v860, %v861
        %v863 = vrot.slane %v862, 1
        %v864 = vadd.f32 %v862, %v863
        %v865 = vrot.slane %v708, 4
        %v866 = vadd.f32 %v708, %v865
        %v867 = vrot.slane %v866, 2
        %v868 = vadd.f32 %v866, %v867
        %v869 = vrot.slane %v868, 1
        %v870 = vadd.f32 %v868, %v869
        %v871 = vrot.slane %v709, 4
        %v872 = vadd.f32 %v709, %v871
        %v873 = vrot.slane %v872, 2
        %v874 = vadd.f32 %v872, %v873
        %v875 = vrot.slane %v874, 1
        %v876 = vadd.f32 %v874, %v875
        %v877 = vrot.slane %v710, 4
        %v878 = vadd.f32 %v710, %v877
        %v879 = vrot.slane %v878, 2
        %v880 = vadd.f32 %v878, %v879
        %v881 = vrot.slane %v880, 1
        %v882 = vadd.f32 %v880, %v881
        %v883 = vrot.slane %v711, 4
        %v884 = vadd.f32 %v711, %v883
        %v885 = vrot.slane %v884, 2
        %v886 = vadd.f32 %v884, %v885
        %v887 = vrot.slane %v886, 1
        %v888 = vadd.f32 %v886, %v887
        %v889 = vrot.slane %v712, 4
        %v890 = vadd.f32 %v712, %v889
        %v891 = vrot.slane %v890, 2
        %v892 = vadd.f32 %v890, %v891
        %v893 = vrot.slane %v892, 1
        %v894 = vadd.f32 %v892, %v893
        %v895 = vrot.slane %v713, 4
        %v896 = vadd.f32 %v713, %v895
        %v897 = vrot.slane %v896, 2
        %v898 = vadd.f32 %v896, %v897
        %v899 = vrot.slane %v898, 1
        %v900 = vadd.f32 %v898, %v899
        %v901 = vrot.slane %v714, 4
        %v902 = vadd.f32 %v714, %v901
        %v903 = vrot.slane %v902, 2
        %v904 = vadd.f32 %v902, %v903
        %v905 = vrot.slane %v904, 1
        %v906 = vadd.f32 %v904, %v905
        %v907 = vmul.f32 %v720, %v650
        %v908 = vmul.f32 %v726, %v650
        %v909 = vmul.f32 %v732, %v650
        %v910 = vmul.f32 %v738, %v650
        %v911 = vmul.f32 %v744, %v650
        %v912 = vmul.f32 %v750, %v650
        %v913 = vmul.f32 %v756, %v650
        %v914 = vmul.f32 %v762, %v650
        %v915 = vmul.f32 %v768, %v650
        %v916 = vmul.f32 %v774, %v650
        %v917 = vmul.f32 %v780, %v650
        %v918 = vmul.f32 %v786, %v650
        %v919 = vmul.f32 %v792, %v650
        %v920 = vmul.f32 %v798, %v650
        %v921 = vmul.f32 %v804, %v650
        %v922 = vmul.f32 %v810, %v650
        %v923 = vmul.f32 %v816, %v650
        %v924 = vmul.f32 %v822, %v650
        %v925 = vmul.f32 %v828, %v650
        %v926 = vmul.f32 %v834, %v650
        %v927 = vmul.f32 %v840, %v650
        %v928 = vmul.f32 %v846, %v650
        %v929 = vmul.f32 %v852, %v650
        %v930 = vmul.f32 %v858, %v650
        %v931 = vmul.f32 %v864, %v650
        %v932 = vmul.f32 %v870, %v650
        %v933 = vmul.f32 %v876, %v650
        %v934 = vmul.f32 %v882, %v650
        %v935 = vmul.f32 %v888, %v650
        %v936 = vmul.f32 %v894, %v650
        %v937 = vmul.f32 %v900, %v650
        %v938 = vmul.f32 %v906, %v650
        %vm971 = vcmask 1041409
        %v972 = vsel %vm971, %v652, %v651
        %vm973 = vcmask 1042434
        %v974 = vsel %vm973, %v653, %v972
        %vm975 = vcmask 1043459
        %v976 = vsel %vm975, %v654, %v974
        %vm977 = vcmask 1044484
        %v978 = vsel %vm977, %v655, %v976
        %vm979 = vcmask 1045509
        %v980 = vsel %vm979, %v656, %v978
        %vm981 = vcmask 1046534
        %v982 = vsel %vm981, %v657, %v980
        %vm983 = vcmask 1047559
        %v984 = vsel %vm983, %v658, %v982
        %v985 = vsel %vm971, %v660, %v659
        %v986 = vsel %vm973, %v661, %v985
        %v987 = vsel %vm975, %v662, %v986
        %v988 = vsel %vm977, %v663, %v987
        %v989 = vsel %vm979, %v664, %v988
        %v990 = vsel %vm981, %v665, %v989
        %v991 = vsel %vm983, %v666, %v990
        %v992 = vsel %vm971, %v668, %v667
        %v993 = vsel %vm973, %v669, %v992
        %v994 = vsel %vm975, %v670, %v993
        %v995 = vsel %vm977, %v671, %v994
        %v996 = vsel %vm979, %v672, %v995
        %v997 = vsel %vm981, %v673, %v996
        %v998 = vsel %vm983, %v674, %v997
        %v999 = vsel %vm971, %v676, %v675
        %v1000 = vsel %vm973, %v677, %v999
        %v1001 = vsel %vm975, %v678, %v1000
        %v1002 = vsel %vm977, %v679, %v1001
        %v1003 = vsel %vm979, %v680, %v1002
        %v1004 = vsel %vm981, %v681, %v1003
        %v1005 = vsel %vm983, %v682, %v1004
        %v1042 = vsel %vm971, %v908, %v907
        %v1043 = vsel %vm973, %v909, %v1042
        %v1044 = vsel %vm975, %v910, %v1043
        %v1045 = vsel %vm977, %v911, %v1044
        %v1046 = vsel %vm979, %v912, %v1045
        %v1047 = vsel %vm981, %v913, %v1046
        %v1048 = vsel %vm983, %v914, %v1047
        %v1049 = vsel %vm971, %v916, %v915
        %v1050 = vsel %vm973, %v917, %v1049
        %v1051 = vsel %vm975, %v918, %v1050
        %v1052 = vsel %vm977, %v919, %v1051
        %v1053 = vsel %vm979, %v920, %v1052
        %v1054 = vsel %vm981, %v921, %v1053
        %v1055 = vsel %vm983, %v922, %v1054
        %v1056 = vsel %vm971, %v924, %v923
        %v1057 = vsel %vm973, %v925, %v1056
        %v1058 = vsel %vm975, %v926, %v1057
        %v1059 = vsel %vm977, %v927, %v1058
        %v1060 = vsel %vm979, %v928, %v1059
        %v1061 = vsel %vm981, %v929, %v1060
        %v1062 = vsel %vm983, %v930, %v1061
        %v1063 = vsel %vm971, %v932, %v931
        %v1064 = vsel %vm973, %v933, %v1063
        %v1065 = vsel %vm975, %v934, %v1064
        %v1066 = vsel %vm977, %v935, %v1065
        %v1067 = vsel %vm979, %v936, %v1066
        %v1068 = vsel %vm981, %v937, %v1067
        %v1069 = vsel %vm983, %v938, %v1068
        %v1074 = vld [vmem:[#allocation7] sm:$0xff]
        %v1075 = vld [vmem:[#allocation7 + $0x8] sm:$0xff]
        %v1076 = vld [vmem:[#allocation7 + $0x10] sm:$0xff]
        %v1077 = vld [vmem:[#allocation7 + $0x18] sm:$0xff]
        %v1078 = vld [vmem:[#allocation7 + $0x20] sm:$0xff]
        %v1079 = vld [vmem:[#allocation7 + $0x28] sm:$0xff]
        %v1080 = vld [vmem:[#allocation7 + $0x30] sm:$0xff]
        %v1081 = vld [vmem:[#allocation7 + $0x38] sm:$0xff]
        %v1082 = vld [vmem:[#allocation7 + $0x40] sm:$0xff]
        %v1083 = vld [vmem:[#allocation7 + $0x48] sm:$0xff]
        %v1084 = vld [vmem:[#allocation7 + $0x50] sm:$0xff]
        %v1085 = vld [vmem:[#allocation7 + $0x58] sm:$0xff]
        %v1086 = vld [vmem:[#allocation7 + $0x60] sm:$0xff]
        %v1087 = vld [vmem:[#allocation7 + $0x68] sm:$0xff]
        %v1088 = vld [vmem:[#allocation7 + $0x70] sm:$0xff]
        %v1089 = vld [vmem:[#allocation7 + $0x78] sm:$0xff]
        %v1090 = vld [vmem:[%s3] sm:$0x1]
        %v1092 = vperm.slane %v1090, 0
        %1094 = vmatpush.msra.mxu0 %v1089
        %1095 = vmatpush.msra.mxu0 %v1088
        %1096 = vmatpush.msra.mxu0 %v1087
        %1097 = vmatpush.msra.mxu0 %v1086
        %1098 = vmatpush.msra.mxu0 %v1085
        %1099 = vmatpush.msra.mxu0 %v1084
        %1100 = vmatpush.msra.mxu0 %v1083
        %1101 = vmatpush.msra.mxu0 %v1082
        %1102 = vmatpush.msra.mxu0 %v1081
        %1103 = vmatpush.msra.mxu0 %v1080
        %1104 = vmatpush.msra.mxu0 %v1079
        %1105 = vmatpush.msra.mxu0 %v1078
        %1106 = vmatpush.msra.mxu0 %v1077
        %1107 = vmatpush.msra.mxu0 %v1076
        %1108 = vmatpush.msra.mxu0 %v1075
        %1109 = vmatpush.msra.mxu0 %v1074
        %1110 = vmatmul.f32.gmra.mxu0 %v984
        %v1111 = vpop.f32.mrf.mxu0
        %v1112 = vadd.f32 %v1092, %v1111
        %1113 = vmatmul.f32.gmra.mxu0 %v991
        %v1114 = vpop.f32.mrf.mxu0
        %v1115 = vadd.f32 %v1092, %v1114
        %1116 = vmatmul.f32.gmra.mxu0 %v998
        %v1117 = vpop.f32.mrf.mxu0
        %v1118 = vadd.f32 %v1092, %v1117
        %1119 = vmatmul.f32.gmra.mxu0 %v1005
        %v1120 = vpop.f32.mrf.mxu0
        %v1121 = vadd.f32 %v1092, %v1120
        %1122 = vmatmul.f32.gmra.mxu0 %v1048
        %v1123 = vpop.f32.mrf.mxu0
        %v1124 = vadd.f32 %v1092, %v1123
        %1125 = vmatmul.f32.gmra.mxu0 %v1055
        %v1126 = vpop.f32.mrf.mxu0
        %v1127 = vadd.f32 %v1092, %v1126
        %1128 = vmatmul.f32.gmra.mxu0 %v1062
        %v1129 = vpop.f32.mrf.mxu0
        %v1130 = vadd.f32 %v1092, %v1129
        %1131 = vmatmul.f32.gmra.mxu0 %v1069
        %v1132 = vpop.f32.mrf.mxu0
        %v1133 = vadd.f32 %v1092, %v1132
        %1134 = vdwg.mxu0
        %v1135 = vld [vmem:[#allocation8] sm:$0xff]
        %v1136 = vld [vmem:[#allocation8 + $0x8] sm:$0xff]
        %v1137 = vld [vmem:[#allocation8 + $0x10] sm:$0xff]
        %v1138 = vld [vmem:[#allocation8 + $0x18] sm:$0xff]
        %v1139 = vld [vmem:[#allocation8 + $0x20] sm:$0xff]
        %v1140 = vld [vmem:[#allocation8 + $0x28] sm:$0xff]
        %v1141 = vld [vmem:[#allocation8 + $0x30] sm:$0xff]
        %v1142 = vld [vmem:[#allocation8 + $0x38] sm:$0xff]
        %v1143 = vld [vmem:[#allocation8 + $0x40] sm:$0xff]
        %v1144 = vld [vmem:[#allocation8 + $0x48] sm:$0xff]
        %v1145 = vld [vmem:[#allocation8 + $0x50] sm:$0xff]
        %v1146 = vld [vmem:[#allocation8 + $0x58] sm:$0xff]
        %v1147 = vld [vmem:[#allocation8 + $0x60] sm:$0xff]
        %v1148 = vld [vmem:[#allocation8 + $0x68] sm:$0xff]
        %v1149 = vld [vmem:[#allocation8 + $0x70] sm:$0xff]
        %v1150 = vld [vmem:[#allocation8 + $0x78] sm:$0xff]
        %v1151 = vld [vmem:[%s5] sm:$0x1]
        %v1153 = vperm.slane %v1151, 0
        %1155 = vmatpush.msra.mxu0 %v1150
        %1156 = vmatpush.msra.mxu0 %v1149
        %1157 = vmatpush.msra.mxu0 %v1148
        %1158 = vmatpush.msra.mxu0 %v1147
        %1159 = vmatpush.msra.mxu0 %v1146
        %1160 = vmatpush.msra.mxu0 %v1145
        %1161 = vmatpush.msra.mxu0 %v1144
        %1162 = vmatpush.msra.mxu0 %v1143
        %1163 = vmatpush.msra.mxu0 %v1142
        %1164 = vmatpush.msra.mxu0 %v1141
        %1165 = vmatpush.msra.mxu0 %v1140
        %1166 = vmatpush.msra.mxu0 %v1139
        %1167 = vmatpush.msra.mxu0 %v1138
        %1168 = vmatpush.msra.mxu0 %v1137
        %1169 = vmatpush.msra.mxu0 %v1136
        %1170 = vmatpush.msra.mxu0 %v1135
        %1171 = vmatmul.f32.gmra.mxu0 %v1112
        %v1172 = vpop.f32.mrf.mxu0
        %v1173 = vadd.f32 %v1153, %v1172
        %1174 = vmatmul.f32.gmra.mxu0 %v1115
        %v1175 = vpop.f32.mrf.mxu0
        %v1176 = vadd.f32 %v1153, %v1175
        %1177 = vmatmul.f32.gmra.mxu0 %v1118
        %v1178 = vpop.f32.mrf.mxu0
        %v1179 = vadd.f32 %v1153, %v1178
        %1180 = vmatmul.f32.gmra.mxu0 %v1121
        %v1181 = vpop.f32.mrf.mxu0
        %v1182 = vadd.f32 %v1153, %v1181
        %1183 = vmatmul.f32.gmra.mxu0 %v1124
        %v1184 = vpop.f32.mrf.mxu0
        %v1185 = vadd.f32 %v1153, %v1184
        %1186 = vmatmul.f32.gmra.mxu0 %v1127
        %v1187 = vpop.f32.mrf.mxu0
        %v1188 = vadd.f32 %v1153, %v1187
        %1189 = vmatmul.f32.gmra.mxu0 %v1130
        %v1190 = vpop.f32.mrf.mxu0
        %v1191 = vadd.f32 %v1153, %v1190
        %1192 = vmatmul.f32.gmra.mxu0 %v1133
        %v1193 = vpop.f32.mrf.mxu0
        %v1194 = vadd.f32 %v1153, %v1193
        %1195 = vdwg.mxu0
        %v1196 = vmax.f32 %v1173, 0.0
        %v1197 = vmax.f32 %v1176, 0.0
        %v1198 = vmax.f32 %v1179, 0.0
        %v1199 = vmax.f32 %v1182, 0.0
        %v1200 = vmax.f32 %v1185, 0.0
        %v1201 = vmax.f32 %v1188, 0.0
        %v1202 = vmax.f32 %v1191, 0.0
        %v1203 = vmax.f32 %v1194, 0.0
        %v1204 = vld [vmem:[#allocation10] sm:$0xff]
        %v1205 = vld [vmem:[#allocation10 + $0x8] sm:$0xff]
        %v1206 = vld [vmem:[#allocation10 + $0x10] sm:$0xff]
        %v1207 = vld [vmem:[#allocation10 + $0x18] sm:$0xff]
        %v1208 = vld [vmem:[#allocation10 + $0x20] sm:$0xff]
        %v1209 = vld [vmem:[#allocation10 + $0x28] sm:$0xff]
        %v1210 = vld [vmem:[#allocation10 + $0x30] sm:$0xff]
        %v1211 = vld [vmem:[#allocation10 + $0x38] sm:$0xff]
        %v1212 = vld [vmem:[#allocation10 + $0x40] sm:$0xff]
        %v1213 = vld [vmem:[#allocation10 + $0x48] sm:$0xff]
        %v1214 = vld [vmem:[#allocation10 + $0x50] sm:$0xff]
        %v1215 = vld [vmem:[#allocation10 + $0x58] sm:$0xff]
        %v1216 = vld [vmem:[#allocation10 + $0x60] sm:$0xff]
        %v1217 = vld [vmem:[#allocation10 + $0x68] sm:$0xff]
        %v1218 = vld [vmem:[#allocation10 + $0x70] sm:$0xff]
        %v1219 = vld [vmem:[#allocation10 + $0x78] sm:$0xff]
        %v1220 = vld [vmem:[%s7] sm:$0x1]
        %v1222 = vperm.slane %v1220, 0
        %1224 = vmatpush.msra.mxu0 %v1219
        %1225 = vmatpush.msra.mxu0 %v1218
        %1226 = vmatpush.msra.mxu0 %v1217
        %1227 = vmatpush.msra.mxu0 %v1216
        %1228 = vmatpush.msra.mxu0 %v1215
        %1229 = vmatpush.msra.mxu0 %v1214
        %1230 = vmatpush.msra.mxu0 %v1213
        %1231 = vmatpush.msra.mxu0 %v1212
        %1232 = vmatpush.msra.mxu0 %v1211
        %1233 = vmatpush.msra.mxu0 %v1210
        %1234 = vmatpush.msra.mxu0 %v1209
        %1235 = vmatpush.msra.mxu0 %v1208
        %1236 = vmatpush.msra.mxu0 %v1207
        %1237 = vmatpush.msra.mxu0 %v1206
        %1238 = vmatpush.msra.mxu0 %v1205
        %1239 = vmatpush.msra.mxu0 %v1204
        %1240 = vmatmul.f32.gmra.mxu0 %v1196
        %v1241 = vpop.f32.mrf.mxu0
        %v1242 = vadd.f32 %v1222, %v1241
        %1243 = vmatmul.f32.gmra.mxu0 %v1197
        %v1244 = vpop.f32.mrf.mxu0
        %v1245 = vadd.f32 %v1222, %v1244
        %1246 = vmatmul.f32.gmra.mxu0 %v1198
        %v1247 = vpop.f32.mrf.mxu0
        %v1248 = vadd.f32 %v1222, %v1247
        %1249 = vmatmul.f32.gmra.mxu0 %v1199
        %v1250 = vpop.f32.mrf.mxu0
        %v1251 = vadd.f32 %v1222, %v1250
        %1252 = vmatmul.f32.gmra.mxu0 %v1200
        %v1253 = vpop.f32.mrf.mxu0
        %v1254 = vadd.f32 %v1222, %v1253
        %1255 = vmatmul.f32.gmra.mxu0 %v1201
        %v1256 = vpop.f32.mrf.mxu0
        %v1257 = vadd.f32 %v1222, %v1256
        %1258 = vmatmul.f32.gmra.mxu0 %v1202
        %v1259 = vpop.f32.mrf.mxu0
        %v1260 = vadd.f32 %v1222, %v1259
        %1261 = vmatmul.f32.gmra.mxu0 %v1203
        %v1262 = vpop.f32.mrf.mxu0
        %v1263 = vadd.f32 %v1222, %v1262
        %1264 = vdwg.mxu0
        %v1265 = vmul.f32 %v1242, %v1242
        %v1266 = vmul.f32 %v1245, %v1245
        %v1267 = vmul.f32 %v1248, %v1248
        %v1268 = vmul.f32 %v1251, %v1251
        %v1269 = vmul.f32 %v1254, %v1254
        %v1270 = vmul.f32 %v1257, %v1257
        %v1271 = vmul.f32 %v1260, %v1260
        %v1272 = vmul.f32 %v1263, %v1263
        %1273 = vadd.xlane.f32.xlu0 %v1265
        %v1274 = vpop.xlane.xlu0 %1273
        %1275 = vadd.xlane.f32.xlu0 %v1266
        %v1276 = vpop.xlane.xlu0 %1275
        %1277 = vadd.xlane.f32.xlu0 %v1267
        %v1278 = vpop.xlane.xlu0 %1277
        %1279 = vadd.xlane.f32.xlu0 %v1268
        %v1280 = vpop.xlane.xlu0 %1279
        %1281 = vadd.xlane.f32.xlu0 %v1269
        %v1282 = vpop.xlane.xlu0 %1281
        %1283 = vadd.xlane.f32.xlu0 %v1270
        %v1284 = vpop.xlane.xlu0 %1283
        %1285 = vadd.xlane.f32.xlu0 %v1271
        %v1286 = vpop.xlane.xlu0 %1285
        %1287 = vadd.xlane.f32.xlu0 %v1272
        %v1288 = vpop.xlane.xlu0 %1287
        %v1289 = vmax.f32 %v1274, 1e-24
        %v1290 = vmax.f32 %v1276, 1e-24
        %v1291 = vmax.f32 %v1278, 1e-24
        %v1292 = vmax.f32 %v1280, 1e-24
        %v1293 = vmax.f32 %v1282, 1e-24
        %v1294 = vmax.f32 %v1284, 1e-24
        %v1295 = vmax.f32 %v1286, 1e-24
        %v1296 = vmax.f32 %v1288, 1e-24
        %v1297 = vrsqrt.pop %v1289
        %v1298 = vmul.f32 %v1297, %v1289
        %v1299 = vmul.f32 %v1298, %v1297
        %v1300 = vmul.f32 0.5, %v1299
        %v1301 = vsub.f32 1.5, %v1300
        %v1302 = vmul.f32 %v1297, %v1301
        %vm1303 = vweird.f32 %v1289
        %vm1304 = vweird.f32 %v1297
        %vm1305 = vmor %vm1303, %vm1304
        %v1306 = vsel %vm1305, %v1297, %v1302
        %v1307 = vrsqrt.pop %v1290
        %v1308 = vmul.f32 %v1307, %v1290
        %v1309 = vmul.f32 %v1308, %v1307
        %v1310 = vmul.f32 0.5, %v1309
        %v1311 = vsub.f32 1.5, %v1310
        %v1312 = vmul.f32 %v1307, %v1311
        %vm1313 = vweird.f32 %v1290
        %vm1314 = vweird.f32 %v1307
        %vm1315 = vmor %vm1313, %vm1314
        %v1316 = vsel %vm1315, %v1307, %v1312
        %v1317 = vrsqrt.pop %v1291
        %v1318 = vmul.f32 %v1317, %v1291
        %v1319 = vmul.f32 %v1318, %v1317
        %v1320 = vmul.f32 0.5, %v1319
        %v1321 = vsub.f32 1.5, %v1320
        %v1322 = vmul.f32 %v1317, %v1321
        %vm1323 = vweird.f32 %v1291
        %vm1324 = vweird.f32 %v1317
        %vm1325 = vmor %vm1323, %vm1324
        %v1326 = vsel %vm1325, %v1317, %v1322
        %v1327 = vrsqrt.pop %v1292
        %v1328 = vmul.f32 %v1327, %v1292
        %v1329 = vmul.f32 %v1328, %v1327
        %v1330 = vmul.f32 0.5, %v1329
        %v1331 = vsub.f32 1.5, %v1330
        %v1332 = vmul.f32 %v1327, %v1331
        %vm1333 = vweird.f32 %v1292
        %vm1334 = vweird.f32 %v1327
        %vm1335 = vmor %vm1333, %vm1334
        %v1336 = vsel %vm1335, %v1327, %v1332
        %v1337 = vrsqrt.pop %v1293
        %v1338 = vmul.f32 %v1337, %v1293
        %v1339 = vmul.f32 %v1338, %v1337
        %v1340 = vmul.f32 0.5, %v1339
        %v1341 = vsub.f32 1.5, %v1340
        %v1342 = vmul.f32 %v1337, %v1341
        %vm1343 = vweird.f32 %v1293
        %vm1344 = vweird.f32 %v1337
        %vm1345 = vmor %vm1343, %vm1344
        %v1346 = vsel %vm1345, %v1337, %v1342
        %v1347 = vrsqrt.pop %v1294
        %v1348 = vmul.f32 %v1347, %v1294
        %v1349 = vmul.f32 %v1348, %v1347
        %v1350 = vmul.f32 0.5, %v1349
        %v1351 = vsub.f32 1.5, %v1350
        %v1352 = vmul.f32 %v1347, %v1351
        %vm1353 = vweird.f32 %v1294
        %vm1354 = vweird.f32 %v1347
        %vm1355 = vmor %vm1353, %vm1354
        %v1356 = vsel %vm1355, %v1347, %v1352
        %v1357 = vrsqrt.pop %v1295
        %v1358 = vmul.f32 %v1357, %v1295
        %v1359 = vmul.f32 %v1358, %v1357
        %v1360 = vmul.f32 0.5, %v1359
        %v1361 = vsub.f32 1.5, %v1360
        %v1362 = vmul.f32 %v1357, %v1361
        %vm1363 = vweird.f32 %v1295
        %vm1364 = vweird.f32 %v1357
        %vm1365 = vmor %vm1363, %vm1364
        %v1366 = vsel %vm1365, %v1357, %v1362
        %v1367 = vrsqrt.pop %v1296
        %v1368 = vmul.f32 %v1367, %v1296
        %v1369 = vmul.f32 %v1368, %v1367
        %v1370 = vmul.f32 0.5, %v1369
        %v1371 = vsub.f32 1.5, %v1370
        %v1372 = vmul.f32 %v1367, %v1371
        %vm1373 = vweird.f32 %v1296
        %vm1374 = vweird.f32 %v1367
        %vm1375 = vmor %vm1373, %vm1374
        %v1376 = vsel %vm1375, %v1367, %v1372
        %v1377 = vmul.f32 %v1306, 3.7796447
        %v1378 = vmul.f32 %v1316, 3.7796447
        %v1379 = vmul.f32 %v1326, 3.7796447
        %v1380 = vmul.f32 %v1336, 3.7796447
        %v1381 = vmul.f32 %v1346, 3.7796447
        %v1382 = vmul.f32 %v1356, 3.7796447
        %v1383 = vmul.f32 %v1366, 3.7796447
        %v1384 = vmul.f32 %v1376, 3.7796447
        %v1385 = vmul.f32 %v1242, %v1377
        %v1386 = vmul.f32 %v1245, %v1378
        %v1387 = vmul.f32 %v1248, %v1379
        %v1388 = vmul.f32 %v1251, %v1380
        %v1389 = vmul.f32 %v1254, %v1381
        %v1390 = vmul.f32 %v1257, %v1382
        %v1391 = vmul.f32 %v1260, %v1383
        %v1392 = vmul.f32 %v1263, %v1384
        %v1393 = vpack.c.bf16 %v1385, %v1385
        %v1394 = vpack.c.bf16 %v1386, %v1386
        %v1395 = vpack.c.bf16 %v1387, %v1387
        %v1396 = vpack.c.bf16 %v1388, %v1388
        %v1397 = vpack.c.bf16 %v1389, %v1389
        %v1398 = vpack.c.bf16 %v1390, %v1390
        %v1399 = vpack.c.bf16 %v1391, %v1391
        %v1400 = vpack.c.bf16 %v1392, %v1392
        %1401 = vst [vmem:[%s416] sm:$0xf] %v1393
        %1402 = vst [vmem:[%s416 + $0x4] sm:$0xf] %v1394
        %1403 = vst [vmem:[%s416 + $0x8] sm:$0xf] %v1395
        %1404 = vst [vmem:[%s416 + $0xc] sm:$0xf] %v1396
        %s1405 = scalar_lea.vmem %s416, 16 [#allocation11]
        %1406 = vst [vmem:[%s1405] sm:$0xf] %v1397
        %1407 = vst [vmem:[%s1405 + $0x4] sm:$0xf] %v1398
        %1408 = vst [vmem:[%s1405 + $0x8] sm:$0xf] %v1399
        %1409 = vst [vmem:[%s1405 + $0xc] sm:$0xf] %v1400
        %s1410 = sand.u32 %s215, 1
        %s1411 = scalar_lea.sflag [#allocation4], %s1410
        %s1412 = sand.u32 %s215, 1
        %s1413 = smul.addr %s1412, 32
        %s1414 = scalar_lea.vmem [#allocation11], %s1413
        // Predicated region
        $region73: #{tpu_custom_call.1} parent=51 // pred_check
          %p1415 = pneg %p225
        $region74: #{tpu_custom_call.1} parent=51 // pred_check_branch
          %1417 = sbr.rel (%p1415) target = $region76
        $region75: #{tpu_custom_call.1} parent=51 // pred_region
          #allocation13 [shape = 'u32[6]{0}', space=smem, size = 0x18, scoped, tag = 'DMA stride descriptor']
          %s1418 = smul.u32 4, %s29
          %1420 = vsyncadd %s1411, 0
          %s1421 = smul.addr %s1418, 4
          %s1422 = scalar_lea.hbm %s8, %s1421
          %s1424 = sshll.u32 1, 14
          %s1425 = sxor.u32 4294967295, %s1424
          %s1428 = sshll.u32 7, 18
          %s1429 = sxor.u32 4294967295, %s1428
          %s1430 = sand.u32 0, %s1429
          %s1432 = sor.u32 %s1430, 0
          %s1433 = sshll.u32 %s1414, 4
          %s1434 = int_to_ptr.vmem [resolvable:$true] %s1433
          %s1435 = sshll.u32 %s1422, 4
          %s1436 = int_to_ptr.hbm [resolvable:$true] %s1435
          %1442 = sst [smem:[#allocation13]] 256
          %s1443 = scalar_lea.smem [#allocation13], 1
          %1444 = sst [smem:[%s1443]] 512
          %s1445 = scalar_lea.smem [#allocation13], 2
          %1446 = sst [smem:[%s1445]] 4
          %s1447 = scalar_lea.smem [#allocation13], 3
          %1448 = sst [smem:[%s1447]] 64
          %s1449 = scalar_lea.smem [#allocation13], 4
          %1450 = sst [smem:[%s1449]] 64
          %s1451 = scalar_lea.smem [#allocation13], 5
          %1452 = sst [smem:[%s1451]] 4
          %1454 = dma.general %s1434, 512, %s1436, %s1411, [#allocation12], [#allocation13], %s1432, 0
        $region76: #{tpu_custom_call.1} parent=51 // pred_fallthru
          _
      $region52: #{tpu_custom_call.1} parent=5 // pred_fallthru
        _
      %p1455 = scmp.le.s32.totalorder 2, %s24
      // Predicated region
      $region77: #{tpu_custom_call.1} parent=5 // pred_check
        %p1456 = pneg %p1455
      $region78: #{tpu_custom_call.1} parent=5 // pred_check_branch
        %1458 = sbr.rel (%p1456) target = $region80
      $region79: #{tpu_custom_call.1} parent=5 // pred_region
        %s1459 = ssub.s32 %s24, 2
        // Predicated region
        $region81: #{tpu_custom_call.1} parent=79 // pred_check
          %p1460 = pneg %p231
        $region82: #{tpu_custom_call.1} parent=79 // pred_check_branch
          %1462 = sbr.rel (%p1460) target = $region84
        $region83: #{tpu_custom_call.1} parent=79 // pred_region
          %s1463 = sand.u32 %s216, 1
          %s1464 = scalar_lea.sflag [#allocation4], %s1463
          %s1465 = sand.u32 %s216, 1
          %s1466 = smul.addr %s1465, 32
          %s1467 = scalar_lea.vmem [#allocation11], %s1466
          %1469 = dma.done %s1464, 512
        $region84: #{tpu_custom_call.1} parent=79 // pred_fallthru
          _
      $region80: #{tpu_custom_call.1} parent=5 // pred_fallthru
        _
    $region6: #{tpu_custom_call.1} parent=1 // loop_footer
      %s28 = sadd.s32 1, %s24
    $region7: #{tpu_custom_call.1} parent=1 // loop_footer_branch
      %23 = sbr.rel target = $region3
    $region8: #{tpu_custom_call.1} parent=1 // loop_exit
      _
    %1470 = vsyncpa [#allocation3], 1
    %s1471 = scalar_lea.sflag [#allocation3], 1
    %1472 = vsyncpa %s1471, 1
    %1473 = vsyncpa [#allocation6], 1
    %s1474 = scalar_lea.sflag [#allocation6], 1
    %1475 = vsyncpa %s1474, 1
    %1476 = vsyncpa [#allocation9], 1
    %1477 = vsyncpa [#allocation4], 1
    %s1478 = scalar_lea.sflag [#allocation4], 1
    %1479 = vsyncpa %s1478, 1

</llo_original>
